<compile_context>
chip_gen: v5e
topology: v5e:2x2
jax: 0.10.0
libtpu: 0.0.40
codegen_flags: <defaults>
</compile_context>

<pallas_src>
import jax
import jax.numpy as jnp
from jax.experimental import pallas as pl
from jax.experimental.pallas import tpu as pltpu

NEG_SLOPE = 0.2   # LeakyReLU(0.2), matching nn.LeakyReLU(0.2)
TILE_B = 128      # batch rows per grid block (full MXU M on v5e, half on v6e/v7x)
LANE = 128        # TPU lane width


def _leaky_relu(h):
    # For h < 0: 0.2*h > h, so max(h, 0.2*h) == LeakyReLU(0.2)(h).
    return jnp.maximum(h, NEG_SLOPE * h)


def _discriminator_kernel(x_ref,
                          w1_ref, b1_ref,
                          w2_ref, b2_ref,
                          w3_ref, b3_ref,
                          o_ref):
    x = x_ref[...]                                   # (TB, K_pad) f32

    # ---- Linear(input, 512) + LeakyReLU(0.2) ----
    h1 = jnp.dot(x.astype(jnp.bfloat16), w1_ref[...],
                 preferred_element_type=jnp.float32) + b1_ref[...]
    h1 = _leaky_relu(h1)

    # ---- Linear(512, 256) + LeakyReLU(0.2) ----
    h2 = jnp.dot(h1.astype(jnp.bfloat16), w2_ref[...],
                 preferred_element_type=jnp.float32) + b2_ref[...]
    h2 = _leaky_relu(h2)

    # ---- Linear(256, 1) + Sigmoid  (output padded to 128 lanes) ----
    out = jnp.dot(h2.astype(jnp.bfloat16), w3_ref[...],
                  preferred_element_type=jnp.float32) + b3_ref[...]
    o_ref[...] = jax.nn.sigmoid(out)                 # (TB, 128) f32, lane-dense


def discriminator_forward(x, params, *, tile_b=TILE_B):
    """x: (B, input_size) f32. params: dict with w1/b1, w2/b2, w3/b3 (f32, PyTorch layout)."""
    B, in_dim = x.shape

    # Pad contraction dim of layer 1 to a full 128-lane pass and batch to a tile multiple.
    k_pad = pl.cdiv(in_dim, LANE) * LANE
    b_pad = pl.cdiv(B, tile_b) * tile_b
    x_p = jnp.zeros((b_pad, k_pad), jnp.float32).at[:B, :in_dim].set(x)

    # Weights: zero-pad where needed, cast to bf16 (halves VMEM + DMA bytes).
    w1 = jnp.zeros((k_pad, 512), jnp.float32).at[:in_dim, :].set(params["w1"]).astype(jnp.bfloat16)
    w2 = params["w2"].astype(jnp.bfloat16)                                        # (512, 256)
    w3 = jnp.zeros((256, LANE), jnp.float32).at[:, :1].set(params["w3"]).astype(jnp.bfloat16)
    b1 = params["b1"]                                                             # (1, 512) f32
    b2 = params["b2"]                                                             # (1, 256) f32
    b3 = jnp.zeros((1, LANE), jnp.float32).at[:, :1].set(params["b3"])            # (1, 128) f32

    nb = b_pad // tile_b

    # Weights/biases: constant index_map -> VMEM-resident across all grid steps.
    def const_spec(shape):
        return pl.BlockSpec(shape, lambda i: (0, 0))

    out = pl.pallas_call(
        _discriminator_kernel,
        out_shape=jax.ShapeDtypeStruct((b_pad, LANE), jnp.float32),
        grid_spec=pltpu.PrefetchScalarGridSpec(
            num_scalar_prefetch=0,
            grid=(nb,),
            in_specs=[
                pl.BlockSpec((tile_b, k_pad), lambda i: (i, 0)),   # x: tiled over batch
                const_spec((k_pad, 512)), const_spec((1, 512)),
                const_spec((512, 256)), const_spec((1, 256)),
                const_spec((256, LANE)), const_spec((1, LANE)),
            ],
            out_specs=pl.BlockSpec((tile_b, LANE), lambda i: (i, 0)),
        ),
        compiler_params=pltpu.CompilerParams(
            dimension_semantics=("parallel",),
            vmem_limit_bytes=64 * 1024 * 1024,
        ),
    )(x_p, w1, b1, w2, b2, w3, b3)

    return out[:B, :1]


def init_params(key, input_size):
    """PyTorch nn.Linear default init: U[-1/sqrt(fan_in), +1/sqrt(fan_in)]."""
    dims = [(input_size, 512), (512, 256), (256, 1)]
    params = {}
    keys = jax.random.split(key, 2 * len(dims))
    for i, (fan_in, fan_out) in enumerate(dims, start=1):
        bound = 1.0 / jnp.sqrt(jnp.float32(fan_in))
        params[f"w{i}"] = jax.random.uniform(
            keys[2 * (i - 1)], (fan_in, fan_out), jnp.float32, -bound, bound)
        params[f"b{i}"] = jax.random.uniform(
            keys[2 * (i - 1) + 1], (1, fan_out), jnp.float32, -bound, bound)
    return params


def reference_forward(x, p):
    """Pure-JAX f32 reference (PyTorch semantics)."""
    h = x @ p["w1"] + p["b1"]
    h = jnp.where(h > 0, h, NEG_SLOPE * h)
    h = h @ p["w2"] + p["b2"]
    h = jnp.where(h > 0, h, NEG_SLOPE * h)
    return jax.nn.sigmoid(h @ p["w3"] + p["b3"])


if __name__ == "__main__":
    key = jax.random.PRNGKey(0)
    k_param, k_x = jax.random.split(key)

    batch = 256        # >= 128 so each block presents a full MXU M dimension
    input_size = 64    # flattened feature dim of the discriminator input

    params = init_params(k_param, input_size)
    x = jax.random.normal(k_x, (batch, input_size), jnp.float32)

    y = discriminator_forward(x, params)
    jax.block_until_ready(y)

    y_ref = reference_forward(x, params)
    assert y.shape == (batch, 1)
    # bf16 matmul inputs (f32 accumulation) -> loosen tolerance vs. pure-f32 reference.
    assert jnp.allclose(y, y_ref, atol=2e-2, rtol=2e-2), float(jnp.max(jnp.abs(y - y_ref)))

    print("KERNEL_OK")
</pallas_src>

<mosaic_0001>
module attributes {stable_mosaic.version = 11 : i64} {
  func.func @_discriminator_kernel(%arg0: i32, %arg1: memref<128x128xf32, #tpu.memory_space<vmem>>, %arg2: memref<128x512xbf16, #tpu.memory_space<vmem>>, %arg3: memref<1x512xf32, #tpu.memory_space<vmem>>, %arg4: memref<512x256xbf16, #tpu.memory_space<vmem>>, %arg5: memref<1x256xf32, #tpu.memory_space<vmem>>, %arg6: memref<256x128xbf16, #tpu.memory_space<vmem>>, %arg7: memref<1x128xf32, #tpu.memory_space<vmem>>, %arg8: memref<128x128xf32, #tpu.memory_space<vmem>>) attributes {dimension_semantics = [#tpu.dimension_semantics<parallel>], iteration_bounds = array<i64: 2>, scalar_prefetch = 0 : i64, scratch_operands = 0 : i64, tpu.core_type = #tpu.core_type<tc>, window_params = [{transform_indices = @transform_0, window_bounds = array<i64: 128, 128>}, {pipeline_mode = #tpu.pipeline_mode<synchronous>, transform_indices = @transform_1, window_bounds = array<i64: 128, 512>}, {pipeline_mode = #tpu.pipeline_mode<synchronous>, transform_indices = @transform_2, window_bounds = array<i64: 1, 512>}, {pipeline_mode = #tpu.pipeline_mode<synchronous>, transform_indices = @transform_3, window_bounds = array<i64: 512, 256>}, {pipeline_mode = #tpu.pipeline_mode<synchronous>, transform_indices = @transform_4, window_bounds = array<i64: 1, 256>}, {pipeline_mode = #tpu.pipeline_mode<synchronous>, transform_indices = @transform_5, window_bounds = array<i64: 256, 128>}, {pipeline_mode = #tpu.pipeline_mode<synchronous>, transform_indices = @transform_6, window_bounds = array<i64: 1, 128>}, {transform_indices = @transform_7, window_bounds = array<i64: 128, 128>}]} {
    %c0 = arith.constant 0 : index
    %c0_0 = arith.constant 0 : index
    %0 = vector.load %arg1[%c0, %c0_0] : memref<128x128xf32, #tpu.memory_space<vmem>>, vector<128x128xf32>
    %1 = arith.truncf %0 : vector<128x128xf32> to vector<128x128xbf16>
    %c0_1 = arith.constant 0 : index
    %c0_2 = arith.constant 0 : index
    %2 = vector.load %arg2[%c0_1, %c0_2] : memref<128x512xbf16, #tpu.memory_space<vmem>>, vector<128x512xbf16>
    %cst = arith.constant dense<0.000000e+00> : vector<128x512xf32>
    %3 = tpu.matmul %1, %2, %cst {dimension_numbers = #tpu.dot_dimension_numbers<[1], [0], [0], [1], [0, 0, 1, 1], [], []>} : vector<128x128xbf16>, vector<128x512xbf16>, vector<128x512xf32> -> vector<128x512xf32>
    %c0_3 = arith.constant 0 : index
    %c0_4 = arith.constant 0 : index
    %4 = vector.load %arg3[%c0_3, %c0_4] : memref<1x512xf32, #tpu.memory_space<vmem>>, vector<1x512xf32>
    %5 = vector.broadcast %4 : vector<1x512xf32> to vector<128x512xf32>
    %6 = arith.addf %3, %5 : vector<128x512xf32>
    %cst_5 = arith.constant 2.000000e-01 : f32
    %7 = vector.broadcast %cst_5 : f32 to vector<128x512xf32>
    %8 = arith.mulf %7, %6 : vector<128x512xf32>
    %9 = arith.maximumf %6, %8 : vector<128x512xf32>
    %10 = arith.truncf %9 : vector<128x512xf32> to vector<128x512xbf16>
    %c0_6 = arith.constant 0 : index
    %c0_7 = arith.constant 0 : index
    %11 = vector.load %arg4[%c0_6, %c0_7] : memref<512x256xbf16, #tpu.memory_space<vmem>>, vector<512x256xbf16>
    %cst_8 = arith.constant dense<0.000000e+00> : vector<128x256xf32>
    %12 = tpu.matmul %10, %11, %cst_8 {dimension_numbers = #tpu.dot_dimension_numbers<[1], [0], [0], [1], [0, 0, 1, 1], [], []>} : vector<128x512xbf16>, vector<512x256xbf16>, vector<128x256xf32> -> vector<128x256xf32>
    %c0_9 = arith.constant 0 : index
    %c0_10 = arith.constant 0 : index
    %13 = vector.load %arg5[%c0_9, %c0_10] : memref<1x256xf32, #tpu.memory_space<vmem>>, vector<1x256xf32>
    %14 = vector.broadcast %13 : vector<1x256xf32> to vector<128x256xf32>
    %15 = arith.addf %12, %14 : vector<128x256xf32>
    %cst_11 = arith.constant 2.000000e-01 : f32
    %16 = vector.broadcast %cst_11 : f32 to vector<128x256xf32>
    %17 = arith.mulf %16, %15 : vector<128x256xf32>
    %18 = arith.maximumf %15, %17 : vector<128x256xf32>
    %19 = arith.truncf %18 : vector<128x256xf32> to vector<128x256xbf16>
    %c0_12 = arith.constant 0 : index
    %c0_13 = arith.constant 0 : index
    %20 = vector.load %arg6[%c0_12, %c0_13] : memref<256x128xbf16, #tpu.memory_space<vmem>>, vector<256x128xbf16>
    %cst_14 = arith.constant dense<0.000000e+00> : vector<128x128xf32>
    %21 = tpu.matmul %19, %20, %cst_14 {dimension_numbers = #tpu.dot_dimension_numbers<[1], [0], [0], [1], [0, 0, 1, 1], [], []>} : vector<128x256xbf16>, vector<256x128xbf16>, vector<128x128xf32> -> vector<128x128xf32>
    %c0_15 = arith.constant 0 : index
    %c0_16 = arith.constant 0 : index
    %22 = vector.load %arg7[%c0_15, %c0_16] : memref<1x128xf32, #tpu.memory_space<vmem>>, vector<1x128xf32>
    %23 = vector.broadcast %22 : vector<1x128xf32> to vector<128x128xf32>
    %24 = arith.addf %21, %23 : vector<128x128xf32>
    %25 = arith.negf %24 : vector<128x128xf32>
    %26 = math.exp %25 : vector<128x128xf32>
    %cst_17 = arith.constant 1.000000e+00 : f32
    %27 = vector.broadcast %cst_17 : f32 to vector<128x128xf32>
    %28 = arith.addf %27, %26 : vector<128x128xf32>
    %29 = arith.divf %27, %28 : vector<128x128xf32>
    %c0_18 = arith.constant 0 : index
    %c0_19 = arith.constant 0 : index
    %30 = vector.load %arg8[%c0_18, %c0_19] : memref<128x128xf32, #tpu.memory_space<vmem>>, vector<128x128xf32>
    tpu.vector_store %arg8[%c0_18, %c0_19], %29 {strides = array<i32>} : memref<128x128xf32, #tpu.memory_space<vmem>>, vector<128x128xf32>,
    return
  }
  func.func @transform_0(%arg0: i32) -> (i32, i32) {
    %c0_i32 = arith.constant 0 : i32
    %c0_i32_0 = arith.constant 0 : i32
    return %arg0, %c0_i32 : i32, i32
  }
  func.func @transform_1(%arg0: i32) -> (i32, i32) {
    %c0_i32 = arith.constant 0 : i32
    %c0_i32_0 = arith.constant 0 : i32
    %c0_i32_1 = arith.constant 0 : i32
    return %c0_i32, %c0_i32_0 : i32, i32
  }
  func.func @transform_2(%arg0: i32) -> (i32, i32) {
    %c0_i32 = arith.constant 0 : i32
    %c0_i32_0 = arith.constant 0 : i32
    %c0_i32_1 = arith.constant 0 : i32
    return %c0_i32, %c0_i32_0 : i32, i32
  }
  func.func @transform_3(%arg0: i32) -> (i32, i32) {
    %c0_i32 = arith.constant 0 : i32
    %c0_i32_0 = arith.constant 0 : i32
    %c0_i32_1 = arith.constant 0 : i32
    return %c0_i32, %c0_i32_0 : i32, i32
  }
  func.func @transform_4(%arg0: i32) -> (i32, i32) {
    %c0_i32 = arith.constant 0 : i32
    %c0_i32_0 = arith.constant 0 : i32
    %c0_i32_1 = arith.constant 0 : i32
    return %c0_i32, %c0_i32_0 : i32, i32
  }
  func.func @transform_5(%arg0: i32) -> (i32, i32) {
    %c0_i32 = arith.constant 0 : i32
    %c0_i32_0 = arith.constant 0 : i32
    %c0_i32_1 = arith.constant 0 : i32
    return %c0_i32, %c0_i32_0 : i32, i32
  }
  func.func @transform_6(%arg0: i32) -> (i32, i32) {
    %c0_i32 = arith.constant 0 : i32
    %c0_i32_0 = arith.constant 0 : i32
    %c0_i32_1 = arith.constant 0 : i32
    return %c0_i32, %c0_i32_0 : i32, i32
  }
  func.func @transform_7(%arg0: i32) -> (i32, i32) {
    %c0_i32 = arith.constant 0 : i32
    %c0_i32_0 = arith.constant 0 : i32
    return %arg0, %c0_i32 : i32, i32
  }
}

</mosaic_0001>

<llo_original>
// kernel: tpu_custom_call.1
$region0: #{tpu_custom_call.1}
  #allocation0 [shape = 'u32[]', space=smem, size = 0x4, offset = 0x4, fixed_abs, tag = 'smem constant byte address 0x4 - core index']
  #allocation1 [shape = 'u32[72,128]{1,0:T(1,128)}', space=vmem, size = 0x9000, scoped, tag = 'internal scratch']
  %s0 = inlined_call_operand.hbm [shape: f32[256,128], index: 0, kind: input, shape index: {}]
  %s1 = inlined_call_operand.hbm [shape: bf16[128,512], index: 1, kind: input, shape index: {}]
  %s2 = inlined_call_operand.hbm [shape: f32[1,512], index: 2, kind: input, shape index: {}]
  %s3 = inlined_call_operand.hbm [shape: bf16[512,256], index: 3, kind: input, shape index: {}]
  %s4 = inlined_call_operand.vmem [shape: f32[1,256], index: 4, kind: input, shape index: {}]
  %s5 = inlined_call_operand.hbm [shape: bf16[256,128], index: 5, kind: input, shape index: {}]
  %s6 = inlined_call_operand.vmem [shape: f32[1,128], index: 6, kind: input, shape index: {}]
  %s7 = inlined_call_operand.hbm [shape: f32[256,128], index: 7, kind: output, shape index: {}]
  %s8 = sld [smem:[#allocation0]]
  $region81: #{tpu_custom_call.1} parent=0
    _
  %s10 = ssub.s32 1, %s8
  %s11 = scalar_select 0, %s10, %s8
  $region1: #{tpu_custom_call.1} parent=0
    #allocation2 [shape = 'u8[131072]{0}', space=vmem, size = 0x20000, scoped, tag = 'input window, operand 0']
    #allocation3 [shape = 's32[2]{0}', space=sflag, size = 0x8, scoped, tag = 'scoped memory for tpu_custom_call.1']
    #allocation4 [shape = 's32[2]{0}', space=sflag, size = 0x8, scoped, tag = 'scoped memory for tpu_custom_call.1']
    #allocation5 [shape = 'u8[131072]{0}', space=vmem, size = 0x20000, scoped, tag = 'input window, operand 1, single buffered']
    #allocation6 [shape = 's32[1]{0}', space=sflag, size = 0x4, scoped, tag = 'scoped memory for tpu_custom_call.1']
    #allocation7 [shape = 'u8[2048]{0}', space=vmem, size = 0x800, scoped, tag = 'input window, operand 2, single buffered']
    #allocation8 [shape = 'u8[262144]{0}', space=vmem, size = 0x40000, scoped, tag = 'input window, operand 3, single buffered']
    #allocation9 [shape = 's32[1]{0}', space=sflag, size = 0x4, scoped, tag = 'scoped memory for tpu_custom_call.1']
    #allocation10 [shape = 'u8[65536]{0}', space=vmem, size = 0x10000, scoped, tag = 'input window, operand 5, single buffered']
    #allocation11 [shape = 'u8[131072]{0}', space=vmem, size = 0x20000, scoped, tag = 'output window, operand 0']
    %12 = vsyncpa [#allocation3], 0
    %s13 = scalar_lea.sflag [#allocation3], 1
    %14 = vsyncpa %s13, 0
    %15 = vsyncpa [#allocation6], 0
    %16 = vsyncpa [#allocation9], 0
    %17 = vsyncpa [#allocation4], 0
    %s18 = scalar_lea.sflag [#allocation4], 1
    %19 = vsyncpa %s18, 0
    loop: start=0, step=1, limit=4
    $region2: #{tpu_custom_call.1} parent=1 // loop_pre_header
      _
    $region3: #{tpu_custom_call.1} parent=1 // loop_header
      %s21 = sphi 0, %s25
      %p22 = scmp.ge.s32.totalorder %s21, 4
      %s31 = sphi 0, %s33
      %s34 = sphi 0, %s31
      %s35 = sphi 0, %s34
      %s51 = sphi 0, %s35
      %s55 = sphi 0, %s55
      %s57 = sphi 0, %s55
      %s58 = sphi 0, %s57
      %s72 = sphi 0, %s58
      %s76 = sphi 0, %s76
      %s78 = sphi 0, %s76
      %s79 = sphi 0, %s78
      %s93 = sphi 0, %s79
      %s97 = sphi 0, %s97
      %s99 = sphi 0, %s97
      %s100 = sphi 0, %s99
      %s114 = sphi 0, %s100
      %s118 = sphi 0, %s118
      %s120 = sphi 0, %s118
      %s121 = sphi 0, %s120
      %s135 = sphi 0, %s121
      %s139 = sphi 0, %s139
      %s141 = sphi 0, %s139
      %s142 = sphi 0, %s141
      %s156 = sphi 0, %s142
      %s160 = sphi 0, %s160
      %s162 = sphi 0, %s160
      %s163 = sphi 0, %s162
      %s177 = sphi 0, %s163
      %s183 = sphi 0, %s185
      %s186 = sphi 0, %s183
      %s187 = sphi 0, %s186
      %s203 = sphi 0, %s187
    $region4: #{tpu_custom_call.1} parent=1 // loop_header_branch
      %24 = sbr.rel (%p22) target = $region8
    $region5: #{tpu_custom_call.1} parent=1 // loop_body
      %s26 = ssub.s32 %s21, 1
      %s27 = ssub.s32 %s21, 2
      %s28 = sadd.s32 %s21, 1
      %s29 = ssub.s32 %s21, %s28
      %p30 = scmp.eq.s32.totalorder %s29, 0
      %s32 = sadd.s32 %s31, 1
      %s33 = scalar_select %p30, %s31, %s32
      %p36 = pneg %p30
      %p37 = scmp.eq.s32.totalorder %s21, 1
      %p38 = por %p36, %p37
      %p39 = scmp.ne.s32.totalorder %s31, %s34
      %p40 = scmp.eq.s32.totalorder %s21, 0
      %p41 = por %p39, %p40
      %p42 = scmp.ne.s32.totalorder %s31, %s34
      %p43 = scmp.eq.s32.totalorder %s26, 1
      %p44 = por %p42, %p43
      %p45 = scmp.ne.s32.totalorder %s34, %s35
      %p46 = scmp.eq.s32.totalorder %s26, 0
      %p47 = por %p45, %p46
      %p48 = scmp.ne.s32.totalorder %s34, %s35
      %p49 = scmp.eq.s32.totalorder %s27, 1
      %p50 = por %p48, %p49
      %p52 = scmp.ne.s32.totalorder %s35, %s51
      %p53 = scmp.eq.s32.totalorder %s27, 0
      %p54 = por %p52, %p53
      %s56 = sadd.s32 %s55, 1
      %p59 = scmp.eq.s32.totalorder %s21, 1
      %p60 = scmp.ne.s32.totalorder %s55, %s57
      %p61 = scmp.eq.s32.totalorder %s21, 0
      %p62 = por %p60, %p61
      %p63 = scmp.ne.s32.totalorder %s55, %s57
      %p64 = scmp.eq.s32.totalorder %s26, 1
      %p65 = por %p63, %p64
      %p66 = scmp.ne.s32.totalorder %s57, %s58
      %p67 = scmp.eq.s32.totalorder %s26, 0
      %p68 = por %p66, %p67
      %p69 = scmp.ne.s32.totalorder %s57, %s58
      %p70 = scmp.eq.s32.totalorder %s27, 1
      %p71 = por %p69, %p70
      %p73 = scmp.ne.s32.totalorder %s58, %s72
      %p74 = scmp.eq.s32.totalorder %s27, 0
      %p75 = por %p73, %p74
      %s77 = sadd.s32 %s76, 1
      %p80 = scmp.eq.s32.totalorder %s21, 1
      %p81 = scmp.ne.s32.totalorder %s76, %s78
      %p82 = scmp.eq.s32.totalorder %s21, 0
      %p83 = por %p81, %p82
      %p84 = scmp.ne.s32.totalorder %s76, %s78
      %p85 = scmp.eq.s32.totalorder %s26, 1
      %p86 = por %p84, %p85
      %p87 = scmp.ne.s32.totalorder %s78, %s79
      %p88 = scmp.eq.s32.totalorder %s26, 0
      %p89 = por %p87, %p88
      %p90 = scmp.ne.s32.totalorder %s78, %s79
      %p91 = scmp.eq.s32.totalorder %s27, 1
      %p92 = por %p90, %p91
      %p94 = scmp.ne.s32.totalorder %s79, %s93
      %p95 = scmp.eq.s32.totalorder %s27, 0
      %p96 = por %p94, %p95
      %s98 = sadd.s32 %s97, 1
      %p101 = scmp.eq.s32.totalorder %s21, 1
      %p102 = scmp.ne.s32.totalorder %s97, %s99
      %p103 = scmp.eq.s32.totalorder %s21, 0
      %p104 = por %p102, %p103
      %p105 = scmp.ne.s32.totalorder %s97, %s99
      %p106 = scmp.eq.s32.totalorder %s26, 1
      %p107 = por %p105, %p106
      %p108 = scmp.ne.s32.totalorder %s99, %s100
      %p109 = scmp.eq.s32.totalorder %s26, 0
      %p110 = por %p108, %p109
      %p111 = scmp.ne.s32.totalorder %s99, %s100
      %p112 = scmp.eq.s32.totalorder %s27, 1
      %p113 = por %p111, %p112
      %p115 = scmp.ne.s32.totalorder %s100, %s114
      %p116 = scmp.eq.s32.totalorder %s27, 0
      %p117 = por %p115, %p116
      %s119 = sadd.s32 %s118, 1
      %p122 = scmp.eq.s32.totalorder %s21, 1
      %p123 = scmp.ne.s32.totalorder %s118, %s120
      %p124 = scmp.eq.s32.totalorder %s21, 0
      %p125 = por %p123, %p124
      %p126 = scmp.ne.s32.totalorder %s118, %s120
      %p127 = scmp.eq.s32.totalorder %s26, 1
      %p128 = por %p126, %p127
      %p129 = scmp.ne.s32.totalorder %s120, %s121
      %p130 = scmp.eq.s32.totalorder %s26, 0
      %p131 = por %p129, %p130
      %p132 = scmp.ne.s32.totalorder %s120, %s121
      %p133 = scmp.eq.s32.totalorder %s27, 1
      %p134 = por %p132, %p133
      %p136 = scmp.ne.s32.totalorder %s121, %s135
      %p137 = scmp.eq.s32.totalorder %s27, 0
      %p138 = por %p136, %p137
      %s140 = sadd.s32 %s139, 1
      %p143 = scmp.eq.s32.totalorder %s21, 1
      %p144 = scmp.ne.s32.totalorder %s139, %s141
      %p145 = scmp.eq.s32.totalorder %s21, 0
      %p146 = por %p144, %p145
      %p147 = scmp.ne.s32.totalorder %s139, %s141
      %p148 = scmp.eq.s32.totalorder %s26, 1
      %p149 = por %p147, %p148
      %p150 = scmp.ne.s32.totalorder %s141, %s142
      %p151 = scmp.eq.s32.totalorder %s26, 0
      %p152 = por %p150, %p151
      %p153 = scmp.ne.s32.totalorder %s141, %s142
      %p154 = scmp.eq.s32.totalorder %s27, 1
      %p155 = por %p153, %p154
      %p157 = scmp.ne.s32.totalorder %s142, %s156
      %p158 = scmp.eq.s32.totalorder %s27, 0
      %p159 = por %p157, %p158
      %s161 = sadd.s32 %s160, 1
      %p164 = scmp.eq.s32.totalorder %s21, 1
      %p165 = scmp.ne.s32.totalorder %s160, %s162
      %p166 = scmp.eq.s32.totalorder %s21, 0
      %p167 = por %p165, %p166
      %p168 = scmp.ne.s32.totalorder %s160, %s162
      %p169 = scmp.eq.s32.totalorder %s26, 1
      %p170 = por %p168, %p169
      %p171 = scmp.ne.s32.totalorder %s162, %s163
      %p172 = scmp.eq.s32.totalorder %s26, 0
      %p173 = por %p171, %p172
      %p174 = scmp.ne.s32.totalorder %s162, %s163
      %p175 = scmp.eq.s32.totalorder %s27, 1
      %p176 = por %p174, %p175
      %p178 = scmp.ne.s32.totalorder %s163, %s177
      %p179 = scmp.eq.s32.totalorder %s27, 0
      %p180 = por %p178, %p179
      %s181 = ssub.s32 %s21, %s28
      %p182 = scmp.eq.s32.totalorder %s181, 0
      %s184 = sadd.s32 %s183, 1
      %s185 = scalar_select %p182, %s183, %s184
      %p188 = pneg %p182
      %p189 = scmp.eq.s32.totalorder %s21, 1
      %p190 = por %p188, %p189
      %p191 = scmp.ne.s32.totalorder %s183, %s186
      %p192 = scmp.eq.s32.totalorder %s21, 0
      %p193 = por %p191, %p192
      %p194 = scmp.ne.s32.totalorder %s183, %s186
      %p195 = scmp.eq.s32.totalorder %s26, 1
      %p196 = por %p194, %p195
      %p197 = scmp.ne.s32.totalorder %s186, %s187
      %p198 = scmp.eq.s32.totalorder %s26, 0
      %p199 = por %p197, %p198
      %p200 = scmp.ne.s32.totalorder %s186, %s187
      %p201 = scmp.eq.s32.totalorder %s27, 1
      %p202 = por %p200, %p201
      %p204 = scmp.ne.s32.totalorder %s187, %s203
      %p205 = scmp.eq.s32.totalorder %s27, 0
      %p206 = por %p204, %p205
      %p207 = scmp.le.s32.totalorder 1, %s21
      %p208 = scmp.lt.s32.totalorder %s21, 3
      %p209 = pnand %p207, %p208
      %p210 = pneg %p209
      // Predicated region
      $region9: #{tpu_custom_call.1} parent=5 // pred_check
        _
      $region10: #{tpu_custom_call.1} parent=5 // pred_check_branch
        %212 = sbr.rel (%p209) target = $region12
      $region11: #{tpu_custom_call.1} parent=5 // pred_region
        %s213 = ssub.s32 %s21, 1
        // Predicated region
        $region13: #{tpu_custom_call.1} parent=11 // pred_check
          %p214 = pneg %p68
        $region14: #{tpu_custom_call.1} parent=11 // pred_check_branch
          %216 = sbr.rel (%p214) target = $region16
        $region15: #{tpu_custom_call.1} parent=11 // pred_region
          %218 = vsyncadd [#allocation6], 0
          %s219 = sshll.u32 %s1, 4
          %s220 = int_to_ptr.hbm [resolvable:$true] %s219
          %s221 = sshll.u32 [#allocation5], 4
          %s222 = int_to_ptr.vmem [resolvable:$true] %s221
          %227 = dma.hbm_to_vmem [thread:$0]  %s220, 4096, %s222, [#allocation6], 256, 256, 16
        $region16: #{tpu_custom_call.1} parent=11 // pred_fallthru
          _
        // Predicated region
        $region17: #{tpu_custom_call.1} parent=11 // pred_check
          %p228 = pneg %p89
        $region18: #{tpu_custom_call.1} parent=11 // pred_check_branch
          %230 = sbr.rel (%p228) target = $region20
        $region19: #{tpu_custom_call.1} parent=11 // pred_region
          %232 = vsyncadd [#allocation6], 0
          %s234 = sshll.u32 %s2, 4
          %s235 = int_to_ptr.hbm [resolvable:$true] %s234
          %s236 = sshll.u32 [#allocation7], 4
          %s237 = int_to_ptr.vmem [resolvable:$true] %s236
          %239 = dma.hbm_to_vmem [thread:$0]  %s235, 64, %s237, [#allocation6]
        $region20: #{tpu_custom_call.1} parent=11 // pred_fallthru
          _
        // Predicated region
        $region21: #{tpu_custom_call.1} parent=11 // pred_check
          %p240 = pneg %p110
        $region22: #{tpu_custom_call.1} parent=11 // pred_check_branch
          %242 = sbr.rel (%p240) target = $region24
        $region23: #{tpu_custom_call.1} parent=11 // pred_region
          %244 = vsyncadd [#allocation9], 0
          %s245 = sshll.u32 %s3, 4
          %s246 = int_to_ptr.hbm [resolvable:$true] %s245
          %s247 = sshll.u32 [#allocation8], 4
          %s248 = int_to_ptr.vmem [resolvable:$true] %s247
          %253 = dma.hbm_to_vmem [thread:$0]  %s246, 8192, %s248, [#allocation9], 128, 128, 8
        $region24: #{tpu_custom_call.1} parent=11 // pred_fallthru
          _
        // Predicated region
        $region25: #{tpu_custom_call.1} parent=11 // pred_check
          %p254 = pneg %p131
        $region26: #{tpu_custom_call.1} parent=11 // pred_check_branch
          %256 = sbr.rel (%p254) target = $region28
        $region27: #{tpu_custom_call.1} parent=11 // pred_region
          _
        $region28: #{tpu_custom_call.1} parent=11 // pred_fallthru
          _
        // Predicated region
        $region29: #{tpu_custom_call.1} parent=11 // pred_check
          %p257 = pneg %p152
        $region30: #{tpu_custom_call.1} parent=11 // pred_check_branch
          %259 = sbr.rel (%p257) target = $region32
        $region31: #{tpu_custom_call.1} parent=11 // pred_region
          %261 = vsyncadd [#allocation9], 0
          %s262 = sshll.u32 %s5, 4
          %s263 = int_to_ptr.hbm [resolvable:$true] %s262
          %s264 = sshll.u32 [#allocation10], 4
          %s265 = int_to_ptr.vmem [resolvable:$true] %s264
          %270 = dma.hbm_to_vmem [thread:$0]  %s263, 2048, %s265, [#allocation9], 64, 64, 4
        $region32: #{tpu_custom_call.1} parent=11 // pred_fallthru
          _
        // Predicated region
        $region33: #{tpu_custom_call.1} parent=11 // pred_check
          %p271 = pneg %p173
        $region34: #{tpu_custom_call.1} parent=11 // pred_check_branch
          %273 = sbr.rel (%p271) target = $region36
        $region35: #{tpu_custom_call.1} parent=11 // pred_region
          _
        $region36: #{tpu_custom_call.1} parent=11 // pred_fallthru
          _
      $region12: #{tpu_custom_call.1} parent=5 // pred_fallthru
        _
      %p274 = scmp.lt.s32.totalorder %s21, 2
      // Predicated region
      $region37: #{tpu_custom_call.1} parent=5 // pred_check
        %p275 = pneg %p274
      $region38: #{tpu_custom_call.1} parent=5 // pred_check_branch
        %277 = sbr.rel (%p275) target = $region40
      $region39: #{tpu_custom_call.1} parent=5 // pred_region
        // Predicated region
        $region41: #{tpu_custom_call.1} parent=39 // pred_check
          %p278 = pneg %p41
        $region42: #{tpu_custom_call.1} parent=39 // pred_check_branch
          %280 = sbr.rel (%p278) target = $region44
        $region43: #{tpu_custom_call.1} parent=39 // pred_region
          %s281 = sand.u32 %s31, 1
          %s282 = scalar_lea.sflag [#allocation3], %s281
          %s283 = sand.u32 %s31, 1
          %s284 = smul.addr %s283, 128
          %s285 = scalar_lea.vmem [#allocation2], %s284
          %s286 = smul.u32 16, %s21
          %288 = vsyncadd %s282, 0
          %s289 = smul.addr %s286, 8
          %s290 = scalar_lea.hbm %s0, %s289
          %s291 = sshll.u32 %s290, 4
          %s292 = int_to_ptr.hbm [resolvable:$true] %s291
          %s293 = sshll.u32 %s285, 4
          %s294 = int_to_ptr.vmem [resolvable:$true] %s293
          %299 = dma.hbm_to_vmem [thread:$0]  %s292, 2048, %s294, %s282, 128, 128, 8
        $region44: #{tpu_custom_call.1} parent=39 // pred_fallthru
          _
      $region40: #{tpu_custom_call.1} parent=5 // pred_fallthru
        _
      %p300 = scmp.le.s32.totalorder 1, %s21
      %p301 = scmp.lt.s32.totalorder %s21, 3
      %p302 = pnand %p300, %p301
      %p303 = pneg %p302
      // Predicated region
      $region45: #{tpu_custom_call.1} parent=5 // pred_check
        _
      $region46: #{tpu_custom_call.1} parent=5 // pred_check_branch
        %305 = sbr.rel (%p302) target = $region48
      $region47: #{tpu_custom_call.1} parent=5 // pred_region
        %s306 = ssub.s32 %s21, 1
        %s307 = sand.u32 %s34, 1
        %s308 = scalar_lea.sflag [#allocation3], %s307
        %s309 = sand.u32 %s34, 1
        %s310 = smul.addr %s309, 128
        %s311 = scalar_lea.vmem [#allocation2], %s310
        // Predicated region
        $region49: #{tpu_custom_call.1} parent=47 // pred_check
          %p312 = pneg %p47
        $region50: #{tpu_custom_call.1} parent=47 // pred_check_branch
          %314 = sbr.rel (%p312) target = $region52
        $region51: #{tpu_custom_call.1} parent=47 // pred_region
          %316 = dma.done %s308, 2048
        $region52: #{tpu_custom_call.1} parent=47 // pred_fallthru
          _
        // Predicated region
        $region53: #{tpu_custom_call.1} parent=47 // pred_check
          %p317 = pneg %p68
        $region54: #{tpu_custom_call.1} parent=47 // pred_check_branch
          %319 = sbr.rel (%p317) target = $region56
        $region55: #{tpu_custom_call.1} parent=47 // pred_region
          %321 = dma.done [#allocation6], 4096
        $region56: #{tpu_custom_call.1} parent=47 // pred_fallthru
          _
        // Predicated region
        $region57: #{tpu_custom_call.1} parent=47 // pred_check
          %p322 = pneg %p89
        $region58: #{tpu_custom_call.1} parent=47 // pred_check_branch
          %324 = sbr.rel (%p322) target = $region60
        $region59: #{tpu_custom_call.1} parent=47 // pred_region
          %326 = dma.done [#allocation6], 64
        $region60: #{tpu_custom_call.1} parent=47 // pred_fallthru
          _
        // Predicated region
        $region61: #{tpu_custom_call.1} parent=47 // pred_check
          %p327 = pneg %p110
        $region62: #{tpu_custom_call.1} parent=47 // pred_check_branch
          %329 = sbr.rel (%p327) target = $region64
        $region63: #{tpu_custom_call.1} parent=47 // pred_region
          %331 = dma.done [#allocation9], 8192
        $region64: #{tpu_custom_call.1} parent=47 // pred_fallthru
          _
        // Predicated region
        $region65: #{tpu_custom_call.1} parent=47 // pred_check
          %p332 = pneg %p152
        $region66: #{tpu_custom_call.1} parent=47 // pred_check_branch
          %334 = sbr.rel (%p332) target = $region68
        $region67: #{tpu_custom_call.1} parent=47 // pred_region
          %336 = dma.done [#allocation9], 2048
        $region68: #{tpu_custom_call.1} parent=47 // pred_fallthru
          _
        %s337 = sand.u32 %s34, 1
        %s338 = scalar_lea.sflag [#allocation3], %s337
        %s339 = sand.u32 %s34, 1
        %s340 = smul.addr %s339, 128
        %s341 = scalar_lea.vmem [#allocation2], %s340
        %p342 = pneg %p47
        %p343 = pneg %p44
        %p344 = pneg %p68
        %p345 = pneg %p65
        %p346 = pneg %p89
        %p347 = pneg %p86
        %p348 = pneg %p110
        %p349 = pneg %p107
        %p350 = pneg %p131
        %p351 = pneg %p128
        %p352 = pneg %p152
        %p353 = pneg %p149
        %p354 = pneg %p173
        %p355 = pneg %p170
        %p356 = pneg %p199
        %p357 = pneg %p196
        %s358 = sand.u32 %s186, 1
        %s359 = scalar_lea.sflag [#allocation4], %s358
        %s360 = sand.u32 %s186, 1
        %s361 = smul.addr %s360, 128
        %s362 = scalar_lea.vmem [#allocation11], %s361
        %s363 = smul.u32 16, %s26
        %s364 = smul.u32 16, %s26
        %v365 = vld [vmem:[%s311] sm:$0xff]
        %v366 = vld [vmem:[%s311 + $0x8] sm:$0xff]
        %v367 = vld [vmem:[%s311 + $0x10] sm:$0xff]
        %v368 = vld [vmem:[%s311 + $0x18] sm:$0xff]
        %v369 = vld [vmem:[%s311 + $0x20] sm:$0xff]
        %v370 = vld [vmem:[%s311 + $0x28] sm:$0xff]
        %v371 = vld [vmem:[%s311 + $0x30] sm:$0xff]
        %v372 = vld [vmem:[%s311 + $0x38] sm:$0xff]
        %v373 = vld [vmem:[%s311 + $0x40] sm:$0xff]
        %v374 = vld [vmem:[%s311 + $0x48] sm:$0xff]
        %v375 = vld [vmem:[%s311 + $0x50] sm:$0xff]
        %v376 = vld [vmem:[%s311 + $0x58] sm:$0xff]
        %v377 = vld [vmem:[%s311 + $0x60] sm:$0xff]
        %v378 = vld [vmem:[%s311 + $0x68] sm:$0xff]
        %v379 = vld [vmem:[%s311 + $0x70] sm:$0xff]
        %v380 = vld [vmem:[%s311 + $0x78] sm:$0xff]
        %v381 = vpack.c.bf16 %v366, %v365
        %v382 = vpack.c.bf16 %v368, %v367
        %v383 = vpack.c.bf16 %v370, %v369
        %v384 = vpack.c.bf16 %v372, %v371
        %v385 = vpack.c.bf16 %v374, %v373
        %v386 = vpack.c.bf16 %v376, %v375
        %v387 = vpack.c.bf16 %v378, %v377
        %v388 = vpack.c.bf16 %v380, %v379
        %v389 = vld [vmem:[#allocation5] sm:$0xff]
        %v390 = vld [vmem:[#allocation5 + $0x8] sm:$0xff]
        %v391 = vld [vmem:[#allocation5 + $0x10] sm:$0xff]
        %v392 = vld [vmem:[#allocation5 + $0x18] sm:$0xff]
        %v393 = vld [vmem:[#allocation5 + $0x20] sm:$0xff]
        %v394 = vld [vmem:[#allocation5 + $0x28] sm:$0xff]
        %v395 = vld [vmem:[#allocation5 + $0x30] sm:$0xff]
        %v396 = vld [vmem:[#allocation5 + $0x38] sm:$0xff]
        %v397 = vld [vmem:[#allocation5 + $0x40] sm:$0xff]
        %v398 = vld [vmem:[#allocation5 + $0x48] sm:$0xff]
        %v399 = vld [vmem:[#allocation5 + $0x50] sm:$0xff]
        %v400 = vld [vmem:[#allocation5 + $0x58] sm:$0xff]
        %v401 = vld [vmem:[#allocation5 + $0x60] sm:$0xff]
        %v402 = vld [vmem:[#allocation5 + $0x68] sm:$0xff]
        %v403 = vld [vmem:[#allocation5 + $0x70] sm:$0xff]
        %v404 = vld [vmem:[#allocation5 + $0x78] sm:$0xff]
        %v405 = vld [vmem:[#allocation5 + $0x80] sm:$0xff]
        %v406 = vld [vmem:[#allocation5 + $0x88] sm:$0xff]
        %v407 = vld [vmem:[#allocation5 + $0x90] sm:$0xff]
        %v408 = vld [vmem:[#allocation5 + $0x98] sm:$0xff]
        %v409 = vld [vmem:[#allocation5 + $0xa0] sm:$0xff]
        %v410 = vld [vmem:[#allocation5 + $0xa8] sm:$0xff]
        %v411 = vld [vmem:[#allocation5 + $0xb0] sm:$0xff]
        %v412 = vld [vmem:[#allocation5 + $0xb8] sm:$0xff]
        %v413 = vld [vmem:[#allocation5 + $0xc0] sm:$0xff]
        %v414 = vld [vmem:[#allocation5 + $0xc8] sm:$0xff]
        %v415 = vld [vmem:[#allocation5 + $0xd0] sm:$0xff]
        %v416 = vld [vmem:[#allocation5 + $0xd8] sm:$0xff]
        %v417 = vld [vmem:[#allocation5 + $0xe0] sm:$0xff]
        %v418 = vld [vmem:[#allocation5 + $0xe8] sm:$0xff]
        %v419 = vld [vmem:[#allocation5 + $0xf0] sm:$0xff]
        %v420 = vld [vmem:[#allocation5 + $0xf8] sm:$0xff]
        %v421 = vld [vmem:[#allocation7] sm:$0xf]
        %v423 = vperm.slane %v421, 0
        %v424 = vperm.slane %v421, 1
        %v425 = vperm.slane %v421, 2
        %v426 = vperm.slane %v421, 3
        %v463 = vunpack.c.l.b16 %v389
        %v464 = vunpack.c.h.b16 %v389
        %v465 = vunpack.c.l.b16 %v390
        %v466 = vunpack.c.h.b16 %v390
        %v467 = vunpack.c.l.b16 %v391
        %v468 = vunpack.c.h.b16 %v391
        %v469 = vunpack.c.l.b16 %v392
        %v470 = vunpack.c.h.b16 %v392
        %v471 = vunpack.c.l.b16 %v393
        %v472 = vunpack.c.h.b16 %v393
        %v473 = vunpack.c.l.b16 %v394
        %v474 = vunpack.c.h.b16 %v394
        %v475 = vunpack.c.l.b16 %v395
        %v476 = vunpack.c.h.b16 %v395
        %v477 = vunpack.c.l.b16 %v396
        %v478 = vunpack.c.h.b16 %v396
        %v479 = vunpack.c.l.b16 %v397
        %v480 = vunpack.c.h.b16 %v397
        %v481 = vunpack.c.l.b16 %v398
        %v482 = vunpack.c.h.b16 %v398
        %v483 = vunpack.c.l.b16 %v399
        %v484 = vunpack.c.h.b16 %v399
        %v485 = vunpack.c.l.b16 %v400
        %v486 = vunpack.c.h.b16 %v400
        %v487 = vunpack.c.l.b16 %v401
        %v488 = vunpack.c.h.b16 %v401
        %v489 = vunpack.c.l.b16 %v402
        %v490 = vunpack.c.h.b16 %v402
        %v491 = vunpack.c.l.b16 %v403
        %v492 = vunpack.c.h.b16 %v403
        %v493 = vunpack.c.l.b16 %v404
        %v494 = vunpack.c.h.b16 %v404
        %v495 = vunpack.c.l.b16 %v405
        %v496 = vunpack.c.h.b16 %v405
        %v497 = vunpack.c.l.b16 %v406
        %v498 = vunpack.c.h.b16 %v406
        %v499 = vunpack.c.l.b16 %v407
        %v500 = vunpack.c.h.b16 %v407
        %v501 = vunpack.c.l.b16 %v408
        %v502 = vunpack.c.h.b16 %v408
        %v503 = vunpack.c.l.b16 %v409
        %v504 = vunpack.c.h.b16 %v409
        %v505 = vunpack.c.l.b16 %v410
        %v506 = vunpack.c.h.b16 %v410
        %v507 = vunpack.c.l.b16 %v411
        %v508 = vunpack.c.h.b16 %v411
        %v509 = vunpack.c.l.b16 %v412
        %v510 = vunpack.c.h.b16 %v412
        %v511 = vunpack.c.l.b16 %v413
        %v512 = vunpack.c.h.b16 %v413
        %v513 = vunpack.c.l.b16 %v414
        %v514 = vunpack.c.h.b16 %v414
        %v515 = vunpack.c.l.b16 %v415
        %v516 = vunpack.c.h.b16 %v415
        %v517 = vunpack.c.l.b16 %v416
        %v518 = vunpack.c.h.b16 %v416
        %v519 = vunpack.c.l.b16 %v417
        %v520 = vunpack.c.h.b16 %v417
        %v521 = vunpack.c.l.b16 %v418
        %v522 = vunpack.c.h.b16 %v418
        %v523 = vunpack.c.l.b16 %v419
        %v524 = vunpack.c.h.b16 %v419
        %v525 = vunpack.c.l.b16 %v420
        %v526 = vunpack.c.h.b16 %v420
        %v527 = vpack.c.b16 %v467, %v463
        %v528 = vpack.c.b16 %v468, %v464
        %v529 = vpack.c.b16 %v469, %v465
        %v530 = vpack.c.b16 %v470, %v466
        %v531 = vpack.c.b16 %v475, %v471
        %v532 = vpack.c.b16 %v476, %v472
        %v533 = vpack.c.b16 %v477, %v473
        %v534 = vpack.c.b16 %v478, %v474
        %v535 = vpack.c.b16 %v483, %v479
        %v536 = vpack.c.b16 %v484, %v480
        %v537 = vpack.c.b16 %v485, %v481
        %v538 = vpack.c.b16 %v486, %v482
        %v539 = vpack.c.b16 %v491, %v487
        %v540 = vpack.c.b16 %v492, %v488
        %v541 = vpack.c.b16 %v493, %v489
        %v542 = vpack.c.b16 %v494, %v490
        %v543 = vpack.c.b16 %v499, %v495
        %v544 = vpack.c.b16 %v500, %v496
        %v545 = vpack.c.b16 %v501, %v497
        %v546 = vpack.c.b16 %v502, %v498
        %v547 = vpack.c.b16 %v507, %v503
        %v548 = vpack.c.b16 %v508, %v504
        %v549 = vpack.c.b16 %v509, %v505
        %v550 = vpack.c.b16 %v510, %v506
        %v551 = vpack.c.b16 %v515, %v511
        %v552 = vpack.c.b16 %v516, %v512
        %v553 = vpack.c.b16 %v517, %v513
        %v554 = vpack.c.b16 %v518, %v514
        %v555 = vpack.c.b16 %v523, %v519
        %v556 = vpack.c.b16 %v524, %v520
        %v557 = vpack.c.b16 %v525, %v521
        %v558 = vpack.c.b16 %v526, %v522
        %591 = vmatpush.bf16.msra.mxu0 %v555
        %592 = vmatpush.bf16.msra.mxu0 %v551
        %593 = vmatpush.bf16.msra.mxu0 %v547
        %594 = vmatpush.bf16.msra.mxu0 %v543
        %595 = vmatpush.bf16.msra.mxu0 %v539
        %596 = vmatpush.bf16.msra.mxu0 %v535
        %597 = vmatpush.bf16.msra.mxu0 %v531
        %598 = vmatpush.bf16.msra.mxu0 %v527
        %599 = vmatmul.bf16.gmra.mxu0 %v381
        %v600 = vpop.f32.mrf.mxu0
        %v601 = vadd.f32 %v423, %v600
        %v602 = vpop.f32.mrf.mxu0
        %v603 = vadd.f32 %v423, %v602
        %604 = vmatmul.bf16.gmra.mxu0 %v382
        %v605 = vpop.f32.mrf.mxu0
        %v606 = vadd.f32 %v423, %v605
        %v607 = vpop.f32.mrf.mxu0
        %v608 = vadd.f32 %v423, %v607
        %609 = vmatmul.bf16.gmra.mxu0 %v383
        %v610 = vpop.f32.mrf.mxu0
        %v611 = vadd.f32 %v423, %v610
        %v612 = vpop.f32.mrf.mxu0
        %v613 = vadd.f32 %v423, %v612
        %614 = vmatmul.bf16.gmra.mxu0 %v384
        %v615 = vpop.f32.mrf.mxu0
        %v616 = vadd.f32 %v423, %v615
        %v617 = vpop.f32.mrf.mxu0
        %v618 = vadd.f32 %v423, %v617
        %619 = vmatmul.bf16.gmra.mxu0 %v385
        %v620 = vpop.f32.mrf.mxu0
        %v621 = vadd.f32 %v423, %v620
        %v622 = vpop.f32.mrf.mxu0
        %v623 = vadd.f32 %v423, %v622
        %624 = vmatmul.bf16.gmra.mxu0 %v386
        %v625 = vpop.f32.mrf.mxu0
        %v626 = vadd.f32 %v423, %v625
        %v627 = vpop.f32.mrf.mxu0
        %v628 = vadd.f32 %v423, %v627
        %629 = vmatmul.bf16.gmra.mxu0 %v387
        %v630 = vpop.f32.mrf.mxu0
        %v631 = vadd.f32 %v423, %v630
        %v632 = vpop.f32.mrf.mxu0
        %v633 = vadd.f32 %v423, %v632
        %634 = vmatmul.bf16.gmra.mxu0 %v388
        %v635 = vpop.f32.mrf.mxu0
        %v636 = vadd.f32 %v423, %v635
        %v637 = vpop.f32.mrf.mxu0
        %v638 = vadd.f32 %v423, %v637
        %639 = vdwg.mxu0
        %640 = vmatpush.bf16.msra.mxu0 %v556
        %641 = vmatpush.bf16.msra.mxu0 %v552
        %642 = vmatpush.bf16.msra.mxu0 %v548
        %643 = vmatpush.bf16.msra.mxu0 %v544
        %644 = vmatpush.bf16.msra.mxu0 %v540
        %645 = vmatpush.bf16.msra.mxu0 %v536
        %646 = vmatpush.bf16.msra.mxu0 %v532
        %647 = vmatpush.bf16.msra.mxu0 %v528
        %648 = vmatmul.bf16.gmra.mxu0 %v381
        %v649 = vpop.f32.mrf.mxu0
        %v650 = vadd.f32 %v424, %v649
        %v651 = vpop.f32.mrf.mxu0
        %v652 = vadd.f32 %v424, %v651
        %653 = vmatmul.bf16.gmra.mxu0 %v382
        %v654 = vpop.f32.mrf.mxu0
        %v655 = vadd.f32 %v424, %v654
        %v656 = vpop.f32.mrf.mxu0
        %v657 = vadd.f32 %v424, %v656
        %658 = vmatmul.bf16.gmra.mxu0 %v383
        %v659 = vpop.f32.mrf.mxu0
        %v660 = vadd.f32 %v424, %v659
        %v661 = vpop.f32.mrf.mxu0
        %v662 = vadd.f32 %v424, %v661
        %663 = vmatmul.bf16.gmra.mxu0 %v384
        %v664 = vpop.f32.mrf.mxu0
        %v665 = vadd.f32 %v424, %v664
        %v666 = vpop.f32.mrf.mxu0
        %v667 = vadd.f32 %v424, %v666
        %668 = vmatmul.bf16.gmra.mxu0 %v385
        %v669 = vpop.f32.mrf.mxu0
        %v670 = vadd.f32 %v424, %v669
        %v671 = vpop.f32.mrf.mxu0
        %v672 = vadd.f32 %v424, %v671
        %673 = vmatmul.bf16.gmra.mxu0 %v386
        %v674 = vpop.f32.mrf.mxu0
        %v675 = vadd.f32 %v424, %v674
        %v676 = vpop.f32.mrf.mxu0
        %v677 = vadd.f32 %v424, %v676
        %678 = vmatmul.bf16.gmra.mxu0 %v387
        %v679 = vpop.f32.mrf.mxu0
        %v680 = vadd.f32 %v424, %v679
        %v681 = vpop.f32.mrf.mxu0
        %v682 = vadd.f32 %v424, %v681
        %683 = vmatmul.bf16.gmra.mxu0 %v388
        %v684 = vpop.f32.mrf.mxu0
        %v685 = vadd.f32 %v424, %v684
        %v686 = vpop.f32.mrf.mxu0
        %v687 = vadd.f32 %v424, %v686
        %688 = vdwg.mxu0
        %689 = vmatpush.bf16.msra.mxu0 %v557
        %690 = vmatpush.bf16.msra.mxu0 %v553
        %691 = vmatpush.bf16.msra.mxu0 %v549
        %692 = vmatpush.bf16.msra.mxu0 %v545
        %693 = vmatpush.bf16.msra.mxu0 %v541
        %694 = vmatpush.bf16.msra.mxu0 %v537
        %695 = vmatpush.bf16.msra.mxu0 %v533
        %696 = vmatpush.bf16.msra.mxu0 %v529
        %697 = vmatmul.bf16.gmra.mxu0 %v381
        %v698 = vpop.f32.mrf.mxu0
        %v699 = vadd.f32 %v425, %v698
        %v700 = vpop.f32.mrf.mxu0
        %v701 = vadd.f32 %v425, %v700
        %702 = vmatmul.bf16.gmra.mxu0 %v382
        %v703 = vpop.f32.mrf.mxu0
        %v704 = vadd.f32 %v425, %v703
        %v705 = vpop.f32.mrf.mxu0
        %v706 = vadd.f32 %v425, %v705
        %707 = vmatmul.bf16.gmra.mxu0 %v383
        %v708 = vpop.f32.mrf.mxu0
        %v709 = vadd.f32 %v425, %v708
        %v710 = vpop.f32.mrf.mxu0
        %v711 = vadd.f32 %v425, %v710
        %712 = vmatmul.bf16.gmra.mxu0 %v384
        %v713 = vpop.f32.mrf.mxu0
        %v714 = vadd.f32 %v425, %v713
        %v715 = vpop.f32.mrf.mxu0
        %v716 = vadd.f32 %v425, %v715
        %717 = vmatmul.bf16.gmra.mxu0 %v385
        %v718 = vpop.f32.mrf.mxu0
        %v719 = vadd.f32 %v425, %v718
        %v720 = vpop.f32.mrf.mxu0
        %v721 = vadd.f32 %v425, %v720
        %722 = vmatmul.bf16.gmra.mxu0 %v386
        %v723 = vpop.f32.mrf.mxu0
        %v724 = vadd.f32 %v425, %v723
        %v725 = vpop.f32.mrf.mxu0
        %v726 = vadd.f32 %v425, %v725
        %727 = vmatmul.bf16.gmra.mxu0 %v387
        %v728 = vpop.f32.mrf.mxu0
        %v729 = vadd.f32 %v425, %v728
        %v730 = vpop.f32.mrf.mxu0
        %v731 = vadd.f32 %v425, %v730
        %732 = vmatmul.bf16.gmra.mxu0 %v388
        %v733 = vpop.f32.mrf.mxu0
        %v734 = vadd.f32 %v425, %v733
        %v735 = vpop.f32.mrf.mxu0
        %v736 = vadd.f32 %v425, %v735
        %737 = vdwg.mxu0
        %738 = vmatpush.bf16.msra.mxu0 %v558
        %739 = vmatpush.bf16.msra.mxu0 %v554
        %740 = vmatpush.bf16.msra.mxu0 %v550
        %741 = vmatpush.bf16.msra.mxu0 %v546
        %742 = vmatpush.bf16.msra.mxu0 %v542
        %743 = vmatpush.bf16.msra.mxu0 %v538
        %744 = vmatpush.bf16.msra.mxu0 %v534
        %745 = vmatpush.bf16.msra.mxu0 %v530
        %746 = vmatmul.bf16.gmra.mxu0 %v381
        %v747 = vpop.f32.mrf.mxu0
        %v748 = vadd.f32 %v426, %v747
        %v749 = vpop.f32.mrf.mxu0
        %v750 = vadd.f32 %v426, %v749
        %751 = vmatmul.bf16.gmra.mxu0 %v382
        %v752 = vpop.f32.mrf.mxu0
        %v753 = vadd.f32 %v426, %v752
        %v754 = vpop.f32.mrf.mxu0
        %v755 = vadd.f32 %v426, %v754
        %756 = vmatmul.bf16.gmra.mxu0 %v383
        %v757 = vpop.f32.mrf.mxu0
        %v758 = vadd.f32 %v426, %v757
        %v759 = vpop.f32.mrf.mxu0
        %v760 = vadd.f32 %v426, %v759
        %761 = vmatmul.bf16.gmra.mxu0 %v384
        %v762 = vpop.f32.mrf.mxu0
        %v763 = vadd.f32 %v426, %v762
        %v764 = vpop.f32.mrf.mxu0
        %v765 = vadd.f32 %v426, %v764
        %766 = vmatmul.bf16.gmra.mxu0 %v385
        %v767 = vpop.f32.mrf.mxu0
        %v768 = vadd.f32 %v426, %v767
        %v769 = vpop.f32.mrf.mxu0
        %v770 = vadd.f32 %v426, %v769
        %771 = vmatmul.bf16.gmra.mxu0 %v386
        %v772 = vpop.f32.mrf.mxu0
        %v773 = vadd.f32 %v426, %v772
        %v774 = vpop.f32.mrf.mxu0
        %v775 = vadd.f32 %v426, %v774
        %776 = vmatmul.bf16.gmra.mxu0 %v387
        %v777 = vpop.f32.mrf.mxu0
        %v778 = vadd.f32 %v426, %v777
        %v779 = vpop.f32.mrf.mxu0
        %v780 = vadd.f32 %v426, %v779
        %781 = vmatmul.bf16.gmra.mxu0 %v388
        %v782 = vpop.f32.mrf.mxu0
        %v783 = vadd.f32 %v426, %v782
        %v784 = vpop.f32.mrf.mxu0
        %v785 = vadd.f32 %v426, %v784
        %786 = vdwg.mxu0
        %v787 = vmul.f32 %v601, 0.2
        %v788 = vmul.f32 %v650, 0.2
        %v789 = vmul.f32 %v699, 0.2
        %v790 = vmul.f32 %v748, 0.2
        %v791 = vmul.f32 %v603, 0.2
        %v792 = vmul.f32 %v652, 0.2
        %v793 = vmul.f32 %v701, 0.2
        %v794 = vmul.f32 %v750, 0.2
        %v795 = vmul.f32 %v606, 0.2
        %v796 = vmul.f32 %v655, 0.2
        %v797 = vmul.f32 %v704, 0.2
        %v798 = vmul.f32 %v753, 0.2
        %v799 = vmul.f32 %v608, 0.2
        %v800 = vmul.f32 %v657, 0.2
        %v801 = vmul.f32 %v706, 0.2
        %v802 = vmul.f32 %v755, 0.2
        %v803 = vmul.f32 %v611, 0.2
        %v804 = vmul.f32 %v660, 0.2
        %v805 = vmul.f32 %v709, 0.2
        %v806 = vmul.f32 %v758, 0.2
        %v807 = vmul.f32 %v613, 0.2
        %v808 = vmul.f32 %v662, 0.2
        %v809 = vmul.f32 %v711, 0.2
        %v810 = vmul.f32 %v760, 0.2
        %v811 = vmul.f32 %v616, 0.2
        %v812 = vmul.f32 %v665, 0.2
        %v813 = vmul.f32 %v714, 0.2
        %v814 = vmul.f32 %v763, 0.2
        %v815 = vmul.f32 %v618, 0.2
        %v816 = vmul.f32 %v667, 0.2
        %v817 = vmul.f32 %v716, 0.2
        %v818 = vmul.f32 %v765, 0.2
        %v819 = vmul.f32 %v621, 0.2
        %v820 = vmul.f32 %v670, 0.2
        %v821 = vmul.f32 %v719, 0.2
        %v822 = vmul.f32 %v768, 0.2
        %v823 = vmul.f32 %v623, 0.2
        %v824 = vmul.f32 %v672, 0.2
        %v825 = vmul.f32 %v721, 0.2
        %v826 = vmul.f32 %v770, 0.2
        %v827 = vmul.f32 %v626, 0.2
        %v828 = vmul.f32 %v675, 0.2
        %v829 = vmul.f32 %v724, 0.2
        %v830 = vmul.f32 %v773, 0.2
        %v831 = vmul.f32 %v628, 0.2
        %v832 = vmul.f32 %v677, 0.2
        %v833 = vmul.f32 %v726, 0.2
        %v834 = vmul.f32 %v775, 0.2
        %v835 = vmul.f32 %v631, 0.2
        %v836 = vmul.f32 %v680, 0.2
        %v837 = vmul.f32 %v729, 0.2
        %v838 = vmul.f32 %v778, 0.2
        %v839 = vmul.f32 %v633, 0.2
        %v840 = vmul.f32 %v682, 0.2
        %v841 = vmul.f32 %v731, 0.2
        %v842 = vmul.f32 %v780, 0.2
        %v843 = vmul.f32 %v636, 0.2
        %v844 = vmul.f32 %v685, 0.2
        %v845 = vmul.f32 %v734, 0.2
        %v846 = vmul.f32 %v783, 0.2
        %v847 = vmul.f32 %v638, 0.2
        %v848 = vmul.f32 %v687, 0.2
        %v849 = vmul.f32 %v736, 0.2
        %v850 = vmul.f32 %v785, 0.2
        %v851 = vmax.f32 %v601, %v787
        %v852 = vmax.f32 %v650, %v788
        %v853 = vmax.f32 %v699, %v789
        %v854 = vmax.f32 %v748, %v790
        %v855 = vmax.f32 %v603, %v791
        %v856 = vmax.f32 %v652, %v792
        %v857 = vmax.f32 %v701, %v793
        %v858 = vmax.f32 %v750, %v794
        %v859 = vmax.f32 %v606, %v795
        %v860 = vmax.f32 %v655, %v796
        %v861 = vmax.f32 %v704, %v797
        %v862 = vmax.f32 %v753, %v798
        %v863 = vmax.f32 %v608, %v799
        %v864 = vmax.f32 %v657, %v800
        %v865 = vmax.f32 %v706, %v801
        %v866 = vmax.f32 %v755, %v802
        %v867 = vmax.f32 %v611, %v803
        %v868 = vmax.f32 %v660, %v804
        %v869 = vmax.f32 %v709, %v805
        %v870 = vmax.f32 %v758, %v806
        %v871 = vmax.f32 %v613, %v807
        %v872 = vmax.f32 %v662, %v808
        %v873 = vmax.f32 %v711, %v809
        %v874 = vmax.f32 %v760, %v810
        %v875 = vmax.f32 %v616, %v811
        %v876 = vmax.f32 %v665, %v812
        %v877 = vmax.f32 %v714, %v813
        %v878 = vmax.f32 %v763, %v814
        %v879 = vmax.f32 %v618, %v815
        %v880 = vmax.f32 %v667, %v816
        %v881 = vmax.f32 %v716, %v817
        %v882 = vmax.f32 %v765, %v818
        %v883 = vmax.f32 %v621, %v819
        %v884 = vmax.f32 %v670, %v820
        %v885 = vmax.f32 %v719, %v821
        %v886 = vmax.f32 %v768, %v822
        %v887 = vmax.f32 %v623, %v823
        %v888 = vmax.f32 %v672, %v824
        %v889 = vmax.f32 %v721, %v825
        %v890 = vmax.f32 %v770, %v826
        %v891 = vmax.f32 %v626, %v827
        %v892 = vmax.f32 %v675, %v828
        %v893 = vmax.f32 %v724, %v829
        %v894 = vmax.f32 %v773, %v830
        %v895 = vmax.f32 %v628, %v831
        %v896 = vmax.f32 %v677, %v832
        %v897 = vmax.f32 %v726, %v833
        %v898 = vmax.f32 %v775, %v834
        %v899 = vmax.f32 %v631, %v835
        %v900 = vmax.f32 %v680, %v836
        %v901 = vmax.f32 %v729, %v837
        %v902 = vmax.f32 %v778, %v838
        %v903 = vmax.f32 %v633, %v839
        %v904 = vmax.f32 %v682, %v840
        %v905 = vmax.f32 %v731, %v841
        %v906 = vmax.f32 %v780, %v842
        %v907 = vmax.f32 %v636, %v843
        %v908 = vmax.f32 %v685, %v844
        %v909 = vmax.f32 %v734, %v845
        %v910 = vmax.f32 %v783, %v846
        %v911 = vmax.f32 %v638, %v847
        %v912 = vmax.f32 %v687, %v848
        %v913 = vmax.f32 %v736, %v849
        %v914 = vmax.f32 %v785, %v850
        %v915 = vpack.c.bf16 %v855, %v851
        %v916 = vpack.c.bf16 %v856, %v852
        %v917 = vpack.c.bf16 %v857, %v853
        %v918 = vpack.c.bf16 %v858, %v854
        %v919 = vpack.c.bf16 %v863, %v859
        %v920 = vpack.c.bf16 %v864, %v860
        %v921 = vpack.c.bf16 %v865, %v861
        %v922 = vpack.c.bf16 %v866, %v862
        %v923 = vpack.c.bf16 %v871, %v867
        %v924 = vpack.c.bf16 %v872, %v868
        %v925 = vpack.c.bf16 %v873, %v869
        %v926 = vpack.c.bf16 %v874, %v870
        %v927 = vpack.c.bf16 %v879, %v875
        %v928 = vpack.c.bf16 %v880, %v876
        %v929 = vpack.c.bf16 %v881, %v877
        %v930 = vpack.c.bf16 %v882, %v878
        %v931 = vpack.c.bf16 %v887, %v883
        %v932 = vpack.c.bf16 %v888, %v884
        %v933 = vpack.c.bf16 %v889, %v885
        %v934 = vpack.c.bf16 %v890, %v886
        %v935 = vpack.c.bf16 %v895, %v891
        %v936 = vpack.c.bf16 %v896, %v892
        %v937 = vpack.c.bf16 %v897, %v893
        %v938 = vpack.c.bf16 %v898, %v894
        %v939 = vpack.c.bf16 %v903, %v899
        %v940 = vpack.c.bf16 %v904, %v900
        %v941 = vpack.c.bf16 %v905, %v901
        %v942 = vpack.c.bf16 %v906, %v902
        %v943 = vpack.c.bf16 %v911, %v907
        %v944 = vpack.c.bf16 %v912, %v908
        %v945 = vpack.c.bf16 %v913, %v909
        %v946 = vpack.c.bf16 %v914, %v910
        %v947 = vld [vmem:[#allocation8] sm:$0xff]
        %v948 = vld [vmem:[#allocation8 + $0x8] sm:$0xff]
        %v949 = vld [vmem:[#allocation8 + $0x10] sm:$0xff]
        %v950 = vld [vmem:[#allocation8 + $0x18] sm:$0xff]
        %v951 = vld [vmem:[#allocation8 + $0x20] sm:$0xff]
        %v952 = vld [vmem:[#allocation8 + $0x28] sm:$0xff]
        %v953 = vld [vmem:[#allocation8 + $0x30] sm:$0xff]
        %v954 = vld [vmem:[#allocation8 + $0x38] sm:$0xff]
        %v955 = vld [vmem:[#allocation8 + $0x40] sm:$0xff]
        %v956 = vld [vmem:[#allocation8 + $0x48] sm:$0xff]
        %v957 = vld [vmem:[#allocation8 + $0x50] sm:$0xff]
        %v958 = vld [vmem:[#allocation8 + $0x58] sm:$0xff]
        %v959 = vld [vmem:[#allocation8 + $0x60] sm:$0xff]
        %v960 = vld [vmem:[#allocation8 + $0x68] sm:$0xff]
        %v961 = vld [vmem:[#allocation8 + $0x70] sm:$0xff]
        %v962 = vld [vmem:[#allocation8 + $0x78] sm:$0xff]
        %v963 = vld [vmem:[#allocation8 + $0x80] sm:$0xff]
        %v964 = vld [vmem:[#allocation8 + $0x88] sm:$0xff]
        %v965 = vld [vmem:[#allocation8 + $0x90] sm:$0xff]
        %v966 = vld [vmem:[#allocation8 + $0x98] sm:$0xff]
        %v967 = vld [vmem:[#allocation8 + $0xa0] sm:$0xff]
        %v968 = vld [vmem:[#allocation8 + $0xa8] sm:$0xff]
        %v969 = vld [vmem:[#allocation8 + $0xb0] sm:$0xff]
        %v970 = vld [vmem:[#allocation8 + $0xb8] sm:$0xff]
        %v971 = vld [vmem:[#allocation8 + $0xc0] sm:$0xff]
        %v972 = vld [vmem:[#allocation8 + $0xc8] sm:$0xff]
        %v973 = vld [vmem:[#allocation8 + $0xd0] sm:$0xff]
        %v974 = vld [vmem:[#allocation8 + $0xd8] sm:$0xff]
        %v975 = vld [vmem:[#allocation8 + $0xe0] sm:$0xff]
        %v976 = vld [vmem:[#allocation8 + $0xe8] sm:$0xff]
        %v977 = vld [vmem:[#allocation8 + $0xf0] sm:$0xff]
        %v978 = vld [vmem:[#allocation8 + $0xf8] sm:$0xff]
        %v979 = vld [vmem:[#allocation8 + $0x100] sm:$0xff]
        %v980 = vld [vmem:[#allocation8 + $0x108] sm:$0xff]
        %v981 = vld [vmem:[#allocation8 + $0x110] sm:$0xff]
        %v982 = vld [vmem:[#allocation8 + $0x118] sm:$0xff]
        %v983 = vld [vmem:[#allocation8 + $0x120] sm:$0xff]
        %v984 = vld [vmem:[#allocation8 + $0x128] sm:$0xff]
        %v985 = vld [vmem:[#allocation8 + $0x130] sm:$0xff]
        %v986 = vld [vmem:[#allocation8 + $0x138] sm:$0xff]
        %v987 = vld [vmem:[#allocation8 + $0x140] sm:$0xff]
        %v988 = vld [vmem:[#allocation8 + $0x148] sm:$0xff]
        %v989 = vld [vmem:[#allocation8 + $0x150] sm:$0xff]
        %v990 = vld [vmem:[#allocation8 + $0x158] sm:$0xff]
        %v991 = vld [vmem:[#allocation8 + $0x160] sm:$0xff]
        %v992 = vld [vmem:[#allocation8 + $0x168] sm:$0xff]
        %v993 = vld [vmem:[#allocation8 + $0x170] sm:$0xff]
        %v994 = vld [vmem:[#allocation8 + $0x178] sm:$0xff]
        %v995 = vld [vmem:[#allocation8 + $0x180] sm:$0xff]
        %v996 = vld [vmem:[#allocation8 + $0x188] sm:$0xff]
        %v997 = vld [vmem:[#allocation8 + $0x190] sm:$0xff]
        %v998 = vld [vmem:[#allocation8 + $0x198] sm:$0xff]
        %v999 = vld [vmem:[#allocation8 + $0x1a0] sm:$0xff]
        %v1000 = vld [vmem:[#allocation8 + $0x1a8] sm:$0xff]
        %v1001 = vld [vmem:[#allocation8 + $0x1b0] sm:$0xff]
        %v1002 = vld [vmem:[#allocation8 + $0x1b8] sm:$0xff]
        %v1003 = vld [vmem:[#allocation8 + $0x1c0] sm:$0xff]
        %v1004 = vld [vmem:[#allocation8 + $0x1c8] sm:$0xff]
        %v1005 = vld [vmem:[#allocation8 + $0x1d0] sm:$0xff]
        %v1006 = vld [vmem:[#allocation8 + $0x1d8] sm:$0xff]
        %v1007 = vld [vmem:[#allocation8 + $0x1e0] sm:$0xff]
        %v1008 = vld [vmem:[#allocation8 + $0x1e8] sm:$0xff]
        %v1009 = vld [vmem:[#allocation8 + $0x1f0] sm:$0xff]
        %v1010 = vld [vmem:[#allocation8 + $0x1f8] sm:$0xff]
        %v1011 = vld [vmem:[%s4] sm:$0x3]
        %v1013 = vperm.slane %v1011, 0
        %v1014 = vperm.slane %v1011, 1
        %v1081 = vunpack.c.l.b16 %v947
        %v1082 = vunpack.c.h.b16 %v947
        %v1083 = vunpack.c.l.b16 %v948
        %v1084 = vunpack.c.h.b16 %v948
        %v1085 = vunpack.c.l.b16 %v949
        %v1086 = vunpack.c.h.b16 %v949
        %v1087 = vunpack.c.l.b16 %v950
        %v1088 = vunpack.c.h.b16 %v950
        %v1089 = vunpack.c.l.b16 %v951
        %v1090 = vunpack.c.h.b16 %v951
        %v1091 = vunpack.c.l.b16 %v952
        %v1092 = vunpack.c.h.b16 %v952
        %v1093 = vunpack.c.l.b16 %v953
        %v1094 = vunpack.c.h.b16 %v953
        %v1095 = vunpack.c.l.b16 %v954
        %v1096 = vunpack.c.h.b16 %v954
        %v1097 = vunpack.c.l.b16 %v955
        %v1098 = vunpack.c.h.b16 %v955
        %v1099 = vunpack.c.l.b16 %v956
        %v1100 = vunpack.c.h.b16 %v956
        %v1101 = vunpack.c.l.b16 %v957
        %v1102 = vunpack.c.h.b16 %v957
        %v1103 = vunpack.c.l.b16 %v958
        %v1104 = vunpack.c.h.b16 %v958
        %v1105 = vunpack.c.l.b16 %v959
        %v1106 = vunpack.c.h.b16 %v959
        %v1107 = vunpack.c.l.b16 %v960
        %v1108 = vunpack.c.h.b16 %v960
        %v1109 = vunpack.c.l.b16 %v961
        %v1110 = vunpack.c.h.b16 %v961
        %v1111 = vunpack.c.l.b16 %v962
        %v1112 = vunpack.c.h.b16 %v962
        %v1113 = vunpack.c.l.b16 %v963
        %v1114 = vunpack.c.h.b16 %v963
        %v1115 = vunpack.c.l.b16 %v964
        %v1116 = vunpack.c.h.b16 %v964
        %v1117 = vunpack.c.l.b16 %v965
        %v1118 = vunpack.c.h.b16 %v965
        %v1119 = vunpack.c.l.b16 %v966
        %v1120 = vunpack.c.h.b16 %v966
        %v1121 = vunpack.c.l.b16 %v967
        %v1122 = vunpack.c.h.b16 %v967
        %v1123 = vunpack.c.l.b16 %v968
        %v1124 = vunpack.c.h.b16 %v968
        %v1125 = vunpack.c.l.b16 %v969
        %v1126 = vunpack.c.h.b16 %v969
        %v1127 = vunpack.c.l.b16 %v970
        %v1128 = vunpack.c.h.b16 %v970
        %v1129 = vunpack.c.l.b16 %v971
        %v1130 = vunpack.c.h.b16 %v971
        %v1131 = vunpack.c.l.b16 %v972
        %v1132 = vunpack.c.h.b16 %v972
        %v1133 = vunpack.c.l.b16 %v973
        %v1134 = vunpack.c.h.b16 %v973
        %v1135 = vunpack.c.l.b16 %v974
        %v1136 = vunpack.c.h.b16 %v974
        %v1137 = vunpack.c.l.b16 %v975
        %v1138 = vunpack.c.h.b16 %v975
        %v1139 = vunpack.c.l.b16 %v976
        %v1140 = vunpack.c.h.b16 %v976
        %v1141 = vunpack.c.l.b16 %v977
        %v1142 = vunpack.c.h.b16 %v977
        %v1143 = vunpack.c.l.b16 %v978
        %v1144 = vunpack.c.h.b16 %v978
        %v1145 = vunpack.c.l.b16 %v979
        %v1146 = vunpack.c.h.b16 %v979
        %v1147 = vunpack.c.l.b16 %v980
        %v1148 = vunpack.c.h.b16 %v980
        %v1149 = vunpack.c.l.b16 %v981
        %v1150 = vunpack.c.h.b16 %v981
        %v1151 = vunpack.c.l.b16 %v982
        %v1152 = vunpack.c.h.b16 %v982
        %v1153 = vunpack.c.l.b16 %v983
        %v1154 = vunpack.c.h.b16 %v983
        %v1155 = vunpack.c.l.b16 %v984
        %v1156 = vunpack.c.h.b16 %v984
        %v1157 = vunpack.c.l.b16 %v985
        %v1158 = vunpack.c.h.b16 %v985
        %v1159 = vunpack.c.l.b16 %v986
        %v1160 = vunpack.c.h.b16 %v986
        %v1161 = vunpack.c.l.b16 %v987
        %v1162 = vunpack.c.h.b16 %v987
        %v1163 = vunpack.c.l.b16 %v988
        %v1164 = vunpack.c.h.b16 %v988
        %v1165 = vunpack.c.l.b16 %v989
        %v1166 = vunpack.c.h.b16 %v989
        %v1167 = vunpack.c.l.b16 %v990
        %v1168 = vunpack.c.h.b16 %v990
        %v1169 = vunpack.c.l.b16 %v991
        %v1170 = vunpack.c.h.b16 %v991
        %v1171 = vunpack.c.l.b16 %v992
        %v1172 = vunpack.c.h.b16 %v992
        %v1173 = vunpack.c.l.b16 %v993
        %v1174 = vunpack.c.h.b16 %v993
        %v1175 = vunpack.c.l.b16 %v994
        %v1176 = vunpack.c.h.b16 %v994
        %v1177 = vunpack.c.l.b16 %v995
        %v1178 = vunpack.c.h.b16 %v995
        %v1179 = vunpack.c.l.b16 %v996
        %v1180 = vunpack.c.h.b16 %v996
        %v1181 = vunpack.c.l.b16 %v997
        %v1182 = vunpack.c.h.b16 %v997
        %v1183 = vunpack.c.l.b16 %v998
        %v1184 = vunpack.c.h.b16 %v998
        %v1185 = vunpack.c.l.b16 %v999
        %v1186 = vunpack.c.h.b16 %v999
        %v1187 = vunpack.c.l.b16 %v1000
        %v1188 = vunpack.c.h.b16 %v1000
        %v1189 = vunpack.c.l.b16 %v1001
        %v1190 = vunpack.c.h.b16 %v1001
        %v1191 = vunpack.c.l.b16 %v1002
        %v1192 = vunpack.c.h.b16 %v1002
        %v1193 = vunpack.c.l.b16 %v1003
        %v1194 = vunpack.c.h.b16 %v1003
        %v1195 = vunpack.c.l.b16 %v1004
        %v1196 = vunpack.c.h.b16 %v1004
        %v1197 = vunpack.c.l.b16 %v1005
        %v1198 = vunpack.c.h.b16 %v1005
        %v1199 = vunpack.c.l.b16 %v1006
        %v1200 = vunpack.c.h.b16 %v1006
        %v1201 = vunpack.c.l.b16 %v1007
        %v1202 = vunpack.c.h.b16 %v1007
        %v1203 = vunpack.c.l.b16 %v1008
        %v1204 = vunpack.c.h.b16 %v1008
        %v1205 = vunpack.c.l.b16 %v1009
        %v1206 = vunpack.c.h.b16 %v1009
        %v1207 = vunpack.c.l.b16 %v1010
        %v1208 = vunpack.c.h.b16 %v1010
        %v1209 = vpack.c.b16 %v1083, %v1081
        %v1210 = vpack.c.b16 %v1084, %v1082
        %v1211 = vpack.c.b16 %v1087, %v1085
        %v1212 = vpack.c.b16 %v1088, %v1086
        %v1213 = vpack.c.b16 %v1091, %v1089
        %v1214 = vpack.c.b16 %v1092, %v1090
        %v1215 = vpack.c.b16 %v1095, %v1093
        %v1216 = vpack.c.b16 %v1096, %v1094
        %v1217 = vpack.c.b16 %v1099, %v1097
        %v1218 = vpack.c.b16 %v1100, %v1098
        %v1219 = vpack.c.b16 %v1103, %v1101
        %v1220 = vpack.c.b16 %v1104, %v1102
        %v1221 = vpack.c.b16 %v1107, %v1105
        %v1222 = vpack.c.b16 %v1108, %v1106
        %v1223 = vpack.c.b16 %v1111, %v1109
        %v1224 = vpack.c.b16 %v1112, %v1110
        %v1225 = vpack.c.b16 %v1115, %v1113
        %v1226 = vpack.c.b16 %v1116, %v1114
        %v1227 = vpack.c.b16 %v1119, %v1117
        %v1228 = vpack.c.b16 %v1120, %v1118
        %v1229 = vpack.c.b16 %v1123, %v1121
        %v1230 = vpack.c.b16 %v1124, %v1122
        %v1231 = vpack.c.b16 %v1127, %v1125
        %v1232 = vpack.c.b16 %v1128, %v1126
        %v1233 = vpack.c.b16 %v1131, %v1129
        %v1234 = vpack.c.b16 %v1132, %v1130
        %v1235 = vpack.c.b16 %v1135, %v1133
        %v1236 = vpack.c.b16 %v1136, %v1134
        %v1237 = vpack.c.b16 %v1139, %v1137
        %v1238 = vpack.c.b16 %v1140, %v1138
        %v1239 = vpack.c.b16 %v1143, %v1141
        %v1240 = vpack.c.b16 %v1144, %v1142
        %v1241 = vpack.c.b16 %v1147, %v1145
        %v1242 = vpack.c.b16 %v1148, %v1146
        %v1243 = vpack.c.b16 %v1151, %v1149
        %v1244 = vpack.c.b16 %v1152, %v1150
        %v1245 = vpack.c.b16 %v1155, %v1153
        %v1246 = vpack.c.b16 %v1156, %v1154
        %v1247 = vpack.c.b16 %v1159, %v1157
        %v1248 = vpack.c.b16 %v1160, %v1158
        %v1249 = vpack.c.b16 %v1163, %v1161
        %v1250 = vpack.c.b16 %v1164, %v1162
        %v1251 = vpack.c.b16 %v1167, %v1165
        %v1252 = vpack.c.b16 %v1168, %v1166
        %v1253 = vpack.c.b16 %v1171, %v1169
        %v1254 = vpack.c.b16 %v1172, %v1170
        %v1255 = vpack.c.b16 %v1175, %v1173
        %v1256 = vpack.c.b16 %v1176, %v1174
        %v1257 = vpack.c.b16 %v1179, %v1177
        %v1258 = vpack.c.b16 %v1180, %v1178
        %v1259 = vpack.c.b16 %v1183, %v1181
        %v1260 = vpack.c.b16 %v1184, %v1182
        %v1261 = vpack.c.b16 %v1187, %v1185
        %v1262 = vpack.c.b16 %v1188, %v1186
        %v1263 = vpack.c.b16 %v1191, %v1189
        %v1264 = vpack.c.b16 %v1192, %v1190
        %v1265 = vpack.c.b16 %v1195, %v1193
        %v1266 = vpack.c.b16 %v1196, %v1194
        %v1267 = vpack.c.b16 %v1199, %v1197
        %v1268 = vpack.c.b16 %v1200, %v1198
        %v1269 = vpack.c.b16 %v1203, %v1201
        %v1270 = vpack.c.b16 %v1204, %v1202
        %v1271 = vpack.c.b16 %v1207, %v1205
        %v1272 = vpack.c.b16 %v1208, %v1206
        %1337 = vmatpush.bf16.msra.mxu0 %v1223
        %1338 = vmatpush.bf16.msra.mxu0 %v1221
        %1339 = vmatpush.bf16.msra.mxu0 %v1219
        %1340 = vmatpush.bf16.msra.mxu0 %v1217
        %1341 = vmatpush.bf16.msra.mxu0 %v1215
        %1342 = vmatpush.bf16.msra.mxu0 %v1213
        %1343 = vmatpush.bf16.msra.mxu0 %v1211
        %1344 = vmatpush.bf16.msra.mxu0 %v1209
        %1345 = vmatmul.bf16.gmra.mxu0 %v915
        %v1346 = vpop.f32.mrf.mxu0
        %v1347 = vadd.f32 %v1013, %v1346
        %v1348 = vpop.f32.mrf.mxu0
        %v1349 = vadd.f32 %v1013, %v1348
        %1350 = vmatmul.bf16.gmra.mxu0 %v919
        %v1351 = vpop.f32.mrf.mxu0
        %v1352 = vadd.f32 %v1013, %v1351
        %v1353 = vpop.f32.mrf.mxu0
        %v1354 = vadd.f32 %v1013, %v1353
        %1355 = vmatmul.bf16.gmra.mxu0 %v923
        %v1356 = vpop.f32.mrf.mxu0
        %v1357 = vadd.f32 %v1013, %v1356
        %v1358 = vpop.f32.mrf.mxu0
        %v1359 = vadd.f32 %v1013, %v1358
        %1360 = vmatmul.bf16.gmra.mxu0 %v927
        %v1361 = vpop.f32.mrf.mxu0
        %v1362 = vadd.f32 %v1013, %v1361
        %v1363 = vpop.f32.mrf.mxu0
        %v1364 = vadd.f32 %v1013, %v1363
        %1365 = vmatmul.bf16.gmra.mxu0 %v931
        %v1366 = vpop.f32.mrf.mxu0
        %v1367 = vadd.f32 %v1013, %v1366
        %v1368 = vpop.f32.mrf.mxu0
        %v1369 = vadd.f32 %v1013, %v1368
        %1370 = vmatmul.bf16.gmra.mxu0 %v935
        %v1371 = vpop.f32.mrf.mxu0
        %v1372 = vadd.f32 %v1013, %v1371
        %v1373 = vpop.f32.mrf.mxu0
        %v1374 = vadd.f32 %v1013, %v1373
        %1375 = vmatmul.bf16.gmra.mxu0 %v939
        %v1376 = vpop.f32.mrf.mxu0
        %v1377 = vadd.f32 %v1013, %v1376
        %v1378 = vpop.f32.mrf.mxu0
        %v1379 = vadd.f32 %v1013, %v1378
        %1380 = vmatmul.bf16.gmra.mxu0 %v943
        %v1381 = vpop.f32.mrf.mxu0
        %v1382 = vadd.f32 %v1013, %v1381
        %v1383 = vpop.f32.mrf.mxu0
        %v1384 = vadd.f32 %v1013, %v1383
        %1385 = vdwg.mxu0
        %1386 = vmatpush.bf16.msra.mxu0 %v1239
        %1387 = vmatpush.bf16.msra.mxu0 %v1237
        %1388 = vmatpush.bf16.msra.mxu0 %v1235
        %1389 = vmatpush.bf16.msra.mxu0 %v1233
        %1390 = vmatpush.bf16.msra.mxu0 %v1231
        %1391 = vmatpush.bf16.msra.mxu0 %v1229
        %1392 = vmatpush.bf16.msra.mxu0 %v1227
        %1393 = vmatpush.bf16.msra.mxu0 %v1225
        %1394 = vmatmul.bf16.gmra.mxu0 %v916
        %v1395 = vpop.f32.mrf.mxu0
        %v1396 = vadd.f32 %v1347, %v1395
        %v1397 = vpop.f32.mrf.mxu0
        %v1398 = vadd.f32 %v1349, %v1397
        %1399 = vmatmul.bf16.gmra.mxu0 %v920
        %v1400 = vpop.f32.mrf.mxu0
        %v1401 = vadd.f32 %v1352, %v1400
        %v1402 = vpop.f32.mrf.mxu0
        %v1403 = vadd.f32 %v1354, %v1402
        %1404 = vmatmul.bf16.gmra.mxu0 %v924
        %v1405 = vpop.f32.mrf.mxu0
        %v1406 = vadd.f32 %v1357, %v1405
        %v1407 = vpop.f32.mrf.mxu0
        %v1408 = vadd.f32 %v1359, %v1407
        %1409 = vmatmul.bf16.gmra.mxu0 %v928
        %v1410 = vpop.f32.mrf.mxu0
        %v1411 = vadd.f32 %v1362, %v1410
        %v1412 = vpop.f32.mrf.mxu0
        %v1413 = vadd.f32 %v1364, %v1412
        %1414 = vmatmul.bf16.gmra.mxu0 %v932
        %v1415 = vpop.f32.mrf.mxu0
        %v1416 = vadd.f32 %v1367, %v1415
        %v1417 = vpop.f32.mrf.mxu0
        %v1418 = vadd.f32 %v1369, %v1417
        %1419 = vmatmul.bf16.gmra.mxu0 %v936
        %v1420 = vpop.f32.mrf.mxu0
        %v1421 = vadd.f32 %v1372, %v1420
        %v1422 = vpop.f32.mrf.mxu0
        %v1423 = vadd.f32 %v1374, %v1422
        %1424 = vmatmul.bf16.gmra.mxu0 %v940
        %v1425 = vpop.f32.mrf.mxu0
        %v1426 = vadd.f32 %v1377, %v1425
        %v1427 = vpop.f32.mrf.mxu0
        %v1428 = vadd.f32 %v1379, %v1427
        %1429 = vmatmul.bf16.gmra.mxu0 %v944
        %v1430 = vpop.f32.mrf.mxu0
        %v1431 = vadd.f32 %v1382, %v1430
        %v1432 = vpop.f32.mrf.mxu0
        %v1433 = vadd.f32 %v1384, %v1432
        %1434 = vdwg.mxu0
        %1435 = vmatpush.bf16.msra.mxu0 %v1255
        %1436 = vmatpush.bf16.msra.mxu0 %v1253
        %1437 = vmatpush.bf16.msra.mxu0 %v1251
        %1438 = vmatpush.bf16.msra.mxu0 %v1249
        %1439 = vmatpush.bf16.msra.mxu0 %v1247
        %1440 = vmatpush.bf16.msra.mxu0 %v1245
        %1441 = vmatpush.bf16.msra.mxu0 %v1243
        %1442 = vmatpush.bf16.msra.mxu0 %v1241
        %1443 = vmatmul.bf16.gmra.mxu0 %v917
        %v1444 = vpop.f32.mrf.mxu0
        %v1445 = vadd.f32 %v1396, %v1444
        %v1446 = vpop.f32.mrf.mxu0
        %v1447 = vadd.f32 %v1398, %v1446
        %1448 = vmatmul.bf16.gmra.mxu0 %v921
        %v1449 = vpop.f32.mrf.mxu0
        %v1450 = vadd.f32 %v1401, %v1449
        %v1451 = vpop.f32.mrf.mxu0
        %v1452 = vadd.f32 %v1403, %v1451
        %1453 = vmatmul.bf16.gmra.mxu0 %v925
        %v1454 = vpop.f32.mrf.mxu0
        %v1455 = vadd.f32 %v1406, %v1454
        %v1456 = vpop.f32.mrf.mxu0
        %v1457 = vadd.f32 %v1408, %v1456
        %1458 = vmatmul.bf16.gmra.mxu0 %v929
        %v1459 = vpop.f32.mrf.mxu0
        %v1460 = vadd.f32 %v1411, %v1459
        %v1461 = vpop.f32.mrf.mxu0
        %v1462 = vadd.f32 %v1413, %v1461
        %1463 = vmatmul.bf16.gmra.mxu0 %v933
        %v1464 = vpop.f32.mrf.mxu0
        %v1465 = vadd.f32 %v1416, %v1464
        %v1466 = vpop.f32.mrf.mxu0
        %v1467 = vadd.f32 %v1418, %v1466
        %1468 = vmatmul.bf16.gmra.mxu0 %v937
        %v1469 = vpop.f32.mrf.mxu0
        %v1470 = vadd.f32 %v1421, %v1469
        %v1471 = vpop.f32.mrf.mxu0
        %v1472 = vadd.f32 %v1423, %v1471
        %1473 = vmatmul.bf16.gmra.mxu0 %v941
        %v1474 = vpop.f32.mrf.mxu0
        %v1475 = vadd.f32 %v1426, %v1474
        %v1476 = vpop.f32.mrf.mxu0
        %v1477 = vadd.f32 %v1428, %v1476
        %1478 = vmatmul.bf16.gmra.mxu0 %v945
        %v1479 = vpop.f32.mrf.mxu0
        %v1480 = vadd.f32 %v1431, %v1479
        %v1481 = vpop.f32.mrf.mxu0
        %v1482 = vadd.f32 %v1433, %v1481
        %1483 = vdwg.mxu0
        %1484 = vmatpush.bf16.msra.mxu0 %v1271
        %1485 = vmatpush.bf16.msra.mxu0 %v1269
        %1486 = vmatpush.bf16.msra.mxu0 %v1267
        %1487 = vmatpush.bf16.msra.mxu0 %v1265
        %1488 = vmatpush.bf16.msra.mxu0 %v1263
        %1489 = vmatpush.bf16.msra.mxu0 %v1261
        %1490 = vmatpush.bf16.msra.mxu0 %v1259
        %1491 = vmatpush.bf16.msra.mxu0 %v1257
        %1492 = vmatmul.bf16.gmra.mxu0 %v918
        %v1493 = vpop.f32.mrf.mxu0
        %v1494 = vadd.f32 %v1445, %v1493
        %v1495 = vpop.f32.mrf.mxu0
        %v1496 = vadd.f32 %v1447, %v1495
        %1497 = vmatmul.bf16.gmra.mxu0 %v922
        %v1498 = vpop.f32.mrf.mxu0
        %v1499 = vadd.f32 %v1450, %v1498
        %v1500 = vpop.f32.mrf.mxu0
        %v1501 = vadd.f32 %v1452, %v1500
        %1502 = vmatmul.bf16.gmra.mxu0 %v926
        %v1503 = vpop.f32.mrf.mxu0
        %v1504 = vadd.f32 %v1455, %v1503
        %v1505 = vpop.f32.mrf.mxu0
        %v1506 = vadd.f32 %v1457, %v1505
        %1507 = vmatmul.bf16.gmra.mxu0 %v930
        %v1508 = vpop.f32.mrf.mxu0
        %v1509 = vadd.f32 %v1460, %v1508
        %v1510 = vpop.f32.mrf.mxu0
        %v1511 = vadd.f32 %v1462, %v1510
        %1512 = vmatmul.bf16.gmra.mxu0 %v934
        %v1513 = vpop.f32.mrf.mxu0
        %v1514 = vadd.f32 %v1465, %v1513
        %v1515 = vpop.f32.mrf.mxu0
        %v1516 = vadd.f32 %v1467, %v1515
        %1517 = vmatmul.bf16.gmra.mxu0 %v938
        %v1518 = vpop.f32.mrf.mxu0
        %v1519 = vadd.f32 %v1470, %v1518
        %v1520 = vpop.f32.mrf.mxu0
        %v1521 = vadd.f32 %v1472, %v1520
        %1522 = vmatmul.bf16.gmra.mxu0 %v942
        %v1523 = vpop.f32.mrf.mxu0
        %v1524 = vadd.f32 %v1475, %v1523
        %v1525 = vpop.f32.mrf.mxu0
        %v1526 = vadd.f32 %v1477, %v1525
        %1527 = vmatmul.bf16.gmra.mxu0 %v946
        %v1528 = vpop.f32.mrf.mxu0
        %v1529 = vadd.f32 %v1480, %v1528
        %v1530 = vpop.f32.mrf.mxu0
        %v1531 = vadd.f32 %v1482, %v1530
        %1532 = vdwg.mxu0
        %1533 = vmatpush.bf16.msra.mxu0 %v1224
        %1534 = vmatpush.bf16.msra.mxu0 %v1222
        %1535 = vmatpush.bf16.msra.mxu0 %v1220
        %1536 = vmatpush.bf16.msra.mxu0 %v1218
        %1537 = vmatpush.bf16.msra.mxu0 %v1216
        %1538 = vmatpush.bf16.msra.mxu0 %v1214
        %1539 = vmatpush.bf16.msra.mxu0 %v1212
        %1540 = vmatpush.bf16.msra.mxu0 %v1210
        %1541 = vmatmul.bf16.gmra.mxu0 %v915
        %v1542 = vpop.f32.mrf.mxu0
        %v1543 = vadd.f32 %v1014, %v1542
        %v1544 = vpop.f32.mrf.mxu0
        %v1545 = vadd.f32 %v1014, %v1544
        %1546 = vmatmul.bf16.gmra.mxu0 %v919
        %v1547 = vpop.f32.mrf.mxu0
        %v1548 = vadd.f32 %v1014, %v1547
        %v1549 = vpop.f32.mrf.mxu0
        %v1550 = vadd.f32 %v1014, %v1549
        %1551 = vmatmul.bf16.gmra.mxu0 %v923
        %v1552 = vpop.f32.mrf.mxu0
        %v1553 = vadd.f32 %v1014, %v1552
        %v1554 = vpop.f32.mrf.mxu0
        %v1555 = vadd.f32 %v1014, %v1554
        %1556 = vmatmul.bf16.gmra.mxu0 %v927
        %v1557 = vpop.f32.mrf.mxu0
        %v1558 = vadd.f32 %v1014, %v1557
        %v1559 = vpop.f32.mrf.mxu0
        %v1560 = vadd.f32 %v1014, %v1559
        %1561 = vmatmul.bf16.gmra.mxu0 %v931
        %v1562 = vpop.f32.mrf.mxu0
        %v1563 = vadd.f32 %v1014, %v1562
        %v1564 = vpop.f32.mrf.mxu0
        %v1565 = vadd.f32 %v1014, %v1564
        %1566 = vmatmul.bf16.gmra.mxu0 %v935
        %v1567 = vpop.f32.mrf.mxu0
        %v1568 = vadd.f32 %v1014, %v1567
        %v1569 = vpop.f32.mrf.mxu0
        %v1570 = vadd.f32 %v1014, %v1569
        %1571 = vmatmul.bf16.gmra.mxu0 %v939
        %v1572 = vpop.f32.mrf.mxu0
        %v1573 = vadd.f32 %v1014, %v1572
        %v1574 = vpop.f32.mrf.mxu0
        %v1575 = vadd.f32 %v1014, %v1574
        %1576 = vmatmul.bf16.gmra.mxu0 %v943
        %v1577 = vpop.f32.mrf.mxu0
        %v1578 = vadd.f32 %v1014, %v1577
        %v1579 = vpop.f32.mrf.mxu0
        %v1580 = vadd.f32 %v1014, %v1579
        %1581 = vdwg.mxu0
        %1582 = vmatpush.bf16.msra.mxu0 %v1240
        %1583 = vmatpush.bf16.msra.mxu0 %v1238
        %1584 = vmatpush.bf16.msra.mxu0 %v1236
        %1585 = vmatpush.bf16.msra.mxu0 %v1234
        %1586 = vmatpush.bf16.msra.mxu0 %v1232
        %1587 = vmatpush.bf16.msra.mxu0 %v1230
        %1588 = vmatpush.bf16.msra.mxu0 %v1228
        %1589 = vmatpush.bf16.msra.mxu0 %v1226
        %1590 = vmatmul.bf16.gmra.mxu0 %v916
        %v1591 = vpop.f32.mrf.mxu0
        %v1592 = vadd.f32 %v1543, %v1591
        %v1593 = vpop.f32.mrf.mxu0
        %v1594 = vadd.f32 %v1545, %v1593
        %1595 = vmatmul.bf16.gmra.mxu0 %v920
        %v1596 = vpop.f32.mrf.mxu0
        %v1597 = vadd.f32 %v1548, %v1596
        %v1598 = vpop.f32.mrf.mxu0
        %v1599 = vadd.f32 %v1550, %v1598
        %1600 = vmatmul.bf16.gmra.mxu0 %v924
        %v1601 = vpop.f32.mrf.mxu0
        %v1602 = vadd.f32 %v1553, %v1601
        %v1603 = vpop.f32.mrf.mxu0
        %v1604 = vadd.f32 %v1555, %v1603
        %1605 = vmatmul.bf16.gmra.mxu0 %v928
        %v1606 = vpop.f32.mrf.mxu0
        %v1607 = vadd.f32 %v1558, %v1606
        %v1608 = vpop.f32.mrf.mxu0
        %v1609 = vadd.f32 %v1560, %v1608
        %1610 = vmatmul.bf16.gmra.mxu0 %v932
        %v1611 = vpop.f32.mrf.mxu0
        %v1612 = vadd.f32 %v1563, %v1611
        %v1613 = vpop.f32.mrf.mxu0
        %v1614 = vadd.f32 %v1565, %v1613
        %1615 = vmatmul.bf16.gmra.mxu0 %v936
        %v1616 = vpop.f32.mrf.mxu0
        %v1617 = vadd.f32 %v1568, %v1616
        %v1618 = vpop.f32.mrf.mxu0
        %v1619 = vadd.f32 %v1570, %v1618
        %1620 = vmatmul.bf16.gmra.mxu0 %v940
        %v1621 = vpop.f32.mrf.mxu0
        %v1622 = vadd.f32 %v1573, %v1621
        %v1623 = vpop.f32.mrf.mxu0
        %v1624 = vadd.f32 %v1575, %v1623
        %1625 = vmatmul.bf16.gmra.mxu0 %v944
        %v1626 = vpop.f32.mrf.mxu0
        %v1627 = vadd.f32 %v1578, %v1626
        %v1628 = vpop.f32.mrf.mxu0
        %v1629 = vadd.f32 %v1580, %v1628
        %1630 = vdwg.mxu0
        %1631 = vmatpush.bf16.msra.mxu0 %v1256
        %1632 = vmatpush.bf16.msra.mxu0 %v1254
        %1633 = vmatpush.bf16.msra.mxu0 %v1252
        %1634 = vmatpush.bf16.msra.mxu0 %v1250
        %1635 = vmatpush.bf16.msra.mxu0 %v1248
        %1636 = vmatpush.bf16.msra.mxu0 %v1246
        %1637 = vmatpush.bf16.msra.mxu0 %v1244
        %1638 = vmatpush.bf16.msra.mxu0 %v1242
        %1639 = vmatmul.bf16.gmra.mxu0 %v917
        %v1640 = vpop.f32.mrf.mxu0
        %v1641 = vadd.f32 %v1592, %v1640
        %v1642 = vpop.f32.mrf.mxu0
        %v1643 = vadd.f32 %v1594, %v1642
        %1644 = vmatmul.bf16.gmra.mxu0 %v921
        %v1645 = vpop.f32.mrf.mxu0
        %v1646 = vadd.f32 %v1597, %v1645
        %v1647 = vpop.f32.mrf.mxu0
        %v1648 = vadd.f32 %v1599, %v1647
        %1649 = vmatmul.bf16.gmra.mxu0 %v925
        %v1650 = vpop.f32.mrf.mxu0
        %v1651 = vadd.f32 %v1602, %v1650
        %v1652 = vpop.f32.mrf.mxu0
        %v1653 = vadd.f32 %v1604, %v1652
        %1654 = vmatmul.bf16.gmra.mxu0 %v929
        %v1655 = vpop.f32.mrf.mxu0
        %v1656 = vadd.f32 %v1607, %v1655
        %v1657 = vpop.f32.mrf.mxu0
        %v1658 = vadd.f32 %v1609, %v1657
        %1659 = vmatmul.bf16.gmra.mxu0 %v933
        %v1660 = vpop.f32.mrf.mxu0
        %v1661 = vadd.f32 %v1612, %v1660
        %v1662 = vpop.f32.mrf.mxu0
        %v1663 = vadd.f32 %v1614, %v1662
        %1664 = vmatmul.bf16.gmra.mxu0 %v937
        %v1665 = vpop.f32.mrf.mxu0
        %v1666 = vadd.f32 %v1617, %v1665
        %v1667 = vpop.f32.mrf.mxu0
        %v1668 = vadd.f32 %v1619, %v1667
        %1669 = vmatmul.bf16.gmra.mxu0 %v941
        %v1670 = vpop.f32.mrf.mxu0
        %v1671 = vadd.f32 %v1622, %v1670
        %v1672 = vpop.f32.mrf.mxu0
        %v1673 = vadd.f32 %v1624, %v1672
        %1674 = vmatmul.bf16.gmra.mxu0 %v945
        %v1675 = vpop.f32.mrf.mxu0
        %v1676 = vadd.f32 %v1627, %v1675
        %v1677 = vpop.f32.mrf.mxu0
        %v1678 = vadd.f32 %v1629, %v1677
        %1679 = vdwg.mxu0
        %1680 = vmatpush.bf16.msra.mxu0 %v1272
        %1681 = vmatpush.bf16.msra.mxu0 %v1270
        %1682 = vmatpush.bf16.msra.mxu0 %v1268
        %1683 = vmatpush.bf16.msra.mxu0 %v1266
        %1684 = vmatpush.bf16.msra.mxu0 %v1264
        %1685 = vmatpush.bf16.msra.mxu0 %v1262
        %1686 = vmatpush.bf16.msra.mxu0 %v1260
        %1687 = vmatpush.bf16.msra.mxu0 %v1258
        %1688 = vmatmul.bf16.gmra.mxu0 %v918
        %v1689 = vpop.f32.mrf.mxu0
        %v1690 = vadd.f32 %v1641, %v1689
        %v1691 = vpop.f32.mrf.mxu0
        %v1692 = vadd.f32 %v1643, %v1691
        %1693 = vmatmul.bf16.gmra.mxu0 %v922
        %v1694 = vpop.f32.mrf.mxu0
        %v1695 = vadd.f32 %v1646, %v1694
        %v1696 = vpop.f32.mrf.mxu0
        %v1697 = vadd.f32 %v1648, %v1696
        %1698 = vmatmul.bf16.gmra.mxu0 %v926
        %v1699 = vpop.f32.mrf.mxu0
        %v1700 = vadd.f32 %v1651, %v1699
        %v1701 = vpop.f32.mrf.mxu0
        %v1702 = vadd.f32 %v1653, %v1701
        %1703 = vmatmul.bf16.gmra.mxu0 %v930
        %v1704 = vpop.f32.mrf.mxu0
        %v1705 = vadd.f32 %v1656, %v1704
        %v1706 = vpop.f32.mrf.mxu0
        %v1707 = vadd.f32 %v1658, %v1706
        %1708 = vmatmul.bf16.gmra.mxu0 %v934
        %v1709 = vpop.f32.mrf.mxu0
        %v1710 = vadd.f32 %v1661, %v1709
        %v1711 = vpop.f32.mrf.mxu0
        %v1712 = vadd.f32 %v1663, %v1711
        %1713 = vmatmul.bf16.gmra.mxu0 %v938
        %v1714 = vpop.f32.mrf.mxu0
        %v1715 = vadd.f32 %v1666, %v1714
        %v1716 = vpop.f32.mrf.mxu0
        %v1717 = vadd.f32 %v1668, %v1716
        %1718 = vmatmul.bf16.gmra.mxu0 %v942
        %v1719 = vpop.f32.mrf.mxu0
        %v1720 = vadd.f32 %v1671, %v1719
        %v1721 = vpop.f32.mrf.mxu0
        %v1722 = vadd.f32 %v1673, %v1721
        %1723 = vmatmul.bf16.gmra.mxu0 %v946
        %v1724 = vpop.f32.mrf.mxu0
        %v1725 = vadd.f32 %v1676, %v1724
        %v1726 = vpop.f32.mrf.mxu0
        %v1727 = vadd.f32 %v1678, %v1726
        %1728 = vdwg.mxu0
        %v1729 = vmul.f32 %v1494, 0.2
        %v1730 = vmul.f32 %v1690, 0.2
        %v1731 = vmul.f32 %v1496, 0.2
        %v1732 = vmul.f32 %v1692, 0.2
        %v1733 = vmul.f32 %v1499, 0.2
        %v1734 = vmul.f32 %v1695, 0.2
        %v1735 = vmul.f32 %v1501, 0.2
        %v1736 = vmul.f32 %v1697, 0.2
        %v1737 = vmul.f32 %v1504, 0.2
        %v1738 = vmul.f32 %v1700, 0.2
        %v1739 = vmul.f32 %v1506, 0.2
        %v1740 = vmul.f32 %v1702, 0.2
        %v1741 = vmul.f32 %v1509, 0.2
        %v1742 = vmul.f32 %v1705, 0.2
        %v1743 = vmul.f32 %v1511, 0.2
        %v1744 = vmul.f32 %v1707, 0.2
        %v1745 = vmul.f32 %v1514, 0.2
        %v1746 = vmul.f32 %v1710, 0.2
        %v1747 = vmul.f32 %v1516, 0.2
        %v1748 = vmul.f32 %v1712, 0.2
        %v1749 = vmul.f32 %v1519, 0.2
        %v1750 = vmul.f32 %v1715, 0.2
        %v1751 = vmul.f32 %v1521, 0.2
        %v1752 = vmul.f32 %v1717, 0.2
        %v1753 = vmul.f32 %v1524, 0.2
        %v1754 = vmul.f32 %v1720, 0.2
        %v1755 = vmul.f32 %v1526, 0.2
        %v1756 = vmul.f32 %v1722, 0.2
        %v1757 = vmul.f32 %v1529, 0.2
        %v1758 = vmul.f32 %v1725, 0.2
        %v1759 = vmul.f32 %v1531, 0.2
        %v1760 = vmul.f32 %v1727, 0.2
        %v1761 = vmax.f32 %v1494, %v1729
        %v1762 = vmax.f32 %v1690, %v1730
        %v1763 = vmax.f32 %v1496, %v1731
        %v1764 = vmax.f32 %v1692, %v1732
        %v1765 = vmax.f32 %v1499, %v1733
        %v1766 = vmax.f32 %v1695, %v1734
        %v1767 = vmax.f32 %v1501, %v1735
        %v1768 = vmax.f32 %v1697, %v1736
        %v1769 = vmax.f32 %v1504, %v1737
        %v1770 = vmax.f32 %v1700, %v1738
        %v1771 = vmax.f32 %v1506, %v1739
        %v1772 = vmax.f32 %v1702, %v1740
        %v1773 = vmax.f32 %v1509, %v1741
        %v1774 = vmax.f32 %v1705, %v1742
        %v1775 = vmax.f32 %v1511, %v1743
        %v1776 = vmax.f32 %v1707, %v1744
        %v1777 = vmax.f32 %v1514, %v1745
        %v1778 = vmax.f32 %v1710, %v1746
        %v1779 = vmax.f32 %v1516, %v1747
        %v1780 = vmax.f32 %v1712, %v1748
        %v1781 = vmax.f32 %v1519, %v1749
        %v1782 = vmax.f32 %v1715, %v1750
        %v1783 = vmax.f32 %v1521, %v1751
        %v1784 = vmax.f32 %v1717, %v1752
        %v1785 = vmax.f32 %v1524, %v1753
        %v1786 = vmax.f32 %v1720, %v1754
        %v1787 = vmax.f32 %v1526, %v1755
        %v1788 = vmax.f32 %v1722, %v1756
        %v1789 = vmax.f32 %v1529, %v1757
        %v1790 = vmax.f32 %v1725, %v1758
        %v1791 = vmax.f32 %v1531, %v1759
        %v1792 = vmax.f32 %v1727, %v1760
        %v1793 = vpack.c.bf16 %v1763, %v1761
        %v1794 = vpack.c.bf16 %v1764, %v1762
        %v1795 = vpack.c.bf16 %v1767, %v1765
        %v1796 = vpack.c.bf16 %v1768, %v1766
        %v1797 = vpack.c.bf16 %v1771, %v1769
        %v1798 = vpack.c.bf16 %v1772, %v1770
        %v1799 = vpack.c.bf16 %v1775, %v1773
        %v1800 = vpack.c.bf16 %v1776, %v1774
        %v1801 = vpack.c.bf16 %v1779, %v1777
        %v1802 = vpack.c.bf16 %v1780, %v1778
        %v1803 = vpack.c.bf16 %v1783, %v1781
        %v1804 = vpack.c.bf16 %v1784, %v1782
        %v1805 = vpack.c.bf16 %v1787, %v1785
        %v1806 = vpack.c.bf16 %v1788, %v1786
        %v1807 = vpack.c.bf16 %v1791, %v1789
        %v1808 = vpack.c.bf16 %v1792, %v1790
        %v1809 = vld [vmem:[#allocation10] sm:$0xf]
        %v1810 = vld [vmem:[#allocation10 + $0x4] sm:$0xf]
        %v1811 = vld [vmem:[#allocation10 + $0x8] sm:$0xf]
        %v1812 = vld [vmem:[#allocation10 + $0xc] sm:$0xf]
        %v1813 = vld [vmem:[#allocation10 + $0x10] sm:$0xf]
        %v1814 = vld [vmem:[#allocation10 + $0x14] sm:$0xf]
        %v1815 = vld [vmem:[#allocation10 + $0x18] sm:$0xf]
        %v1816 = vld [vmem:[#allocation10 + $0x1c] sm:$0xf]
        %v1817 = vld [vmem:[#allocation10 + $0x20] sm:$0xf]
        %v1818 = vld [vmem:[#allocation10 + $0x24] sm:$0xf]
        %v1819 = vld [vmem:[#allocation10 + $0x28] sm:$0xf]
        %v1820 = vld [vmem:[#allocation10 + $0x2c] sm:$0xf]
        %v1821 = vld [vmem:[#allocation10 + $0x30] sm:$0xf]
        %v1822 = vld [vmem:[#allocation10 + $0x34] sm:$0xf]
        %v1823 = vld [vmem:[#allocation10 + $0x38] sm:$0xf]
        %v1824 = vld [vmem:[#allocation10 + $0x3c] sm:$0xf]
        %v1825 = vld [vmem:[#allocation10 + $0x40] sm:$0xf]
        %v1826 = vld [vmem:[#allocation10 + $0x44] sm:$0xf]
        %v1827 = vld [vmem:[#allocation10 + $0x48] sm:$0xf]
        %v1828 = vld [vmem:[#allocation10 + $0x4c] sm:$0xf]
        %v1829 = vld [vmem:[#allocation10 + $0x50] sm:$0xf]
        %v1830 = vld [vmem:[#allocation10 + $0x54] sm:$0xf]
        %v1831 = vld [vmem:[#allocation10 + $0x58] sm:$0xf]
        %v1832 = vld [vmem:[#allocation10 + $0x5c] sm:$0xf]
        %v1833 = vld [vmem:[#allocation10 + $0x60] sm:$0xf]
        %v1834 = vld [vmem:[#allocation10 + $0x64] sm:$0xf]
        %v1835 = vld [vmem:[#allocation10 + $0x68] sm:$0xf]
        %v1836 = vld [vmem:[#allocation10 + $0x6c] sm:$0xf]
        %v1837 = vld [vmem:[#allocation10 + $0x70] sm:$0xf]
        %v1838 = vld [vmem:[#allocation10 + $0x74] sm:$0xf]
        %v1839 = vld [vmem:[#allocation10 + $0x78] sm:$0xf]
        %v1840 = vld [vmem:[#allocation10 + $0x7c] sm:$0xf]
        %v1841 = vld [vmem:[%s6] sm:$0x1]
        %v1843 = vperm.slane %v1841, 0
        %v1877 = vunpack.c.l.b16 %v1809
        %v1878 = vunpack.c.l.b16 %v1810
        %v1879 = vunpack.c.l.b16 %v1811
        %v1880 = vunpack.c.l.b16 %v1812
        %v1881 = vunpack.c.l.b16 %v1813
        %v1882 = vunpack.c.l.b16 %v1814
        %v1883 = vunpack.c.l.b16 %v1815
        %v1884 = vunpack.c.l.b16 %v1816
        %v1885 = vunpack.c.l.b16 %v1817
        %v1886 = vunpack.c.l.b16 %v1818
        %v1887 = vunpack.c.l.b16 %v1819
        %v1888 = vunpack.c.l.b16 %v1820
        %v1889 = vunpack.c.l.b16 %v1821
        %v1890 = vunpack.c.l.b16 %v1822
        %v1891 = vunpack.c.l.b16 %v1823
        %v1892 = vunpack.c.l.b16 %v1824
        %v1893 = vunpack.c.l.b16 %v1825
        %v1894 = vunpack.c.l.b16 %v1826
        %v1895 = vunpack.c.l.b16 %v1827
        %v1896 = vunpack.c.l.b16 %v1828
        %v1897 = vunpack.c.l.b16 %v1829
        %v1898 = vunpack.c.l.b16 %v1830
        %v1899 = vunpack.c.l.b16 %v1831
        %v1900 = vunpack.c.l.b16 %v1832
        %v1901 = vunpack.c.l.b16 %v1833
        %v1902 = vunpack.c.l.b16 %v1834
        %v1903 = vunpack.c.l.b16 %v1835
        %v1904 = vunpack.c.l.b16 %v1836
        %v1905 = vunpack.c.l.b16 %v1837
        %v1906 = vunpack.c.l.b16 %v1838
        %v1907 = vunpack.c.l.b16 %v1839
        %v1908 = vunpack.c.l.b16 %v1840
        %v1909 = vpack.c.b16 %v1878, %v1877
        %v1910 = vpack.c.b16 %v1880, %v1879
        %v1911 = vpack.c.b16 %v1882, %v1881
        %v1912 = vpack.c.b16 %v1884, %v1883
        %v1913 = vpack.c.b16 %v1886, %v1885
        %v1914 = vpack.c.b16 %v1888, %v1887
        %v1915 = vpack.c.b16 %v1890, %v1889
        %v1916 = vpack.c.b16 %v1892, %v1891
        %v1917 = vpack.c.b16 %v1894, %v1893
        %v1918 = vpack.c.b16 %v1896, %v1895
        %v1919 = vpack.c.b16 %v1898, %v1897
        %v1920 = vpack.c.b16 %v1900, %v1899
        %v1921 = vpack.c.b16 %v1902, %v1901
        %v1922 = vpack.c.b16 %v1904, %v1903
        %v1923 = vpack.c.b16 %v1906, %v1905
        %v1924 = vpack.c.b16 %v1908, %v1907
        %1941 = vmatpush.bf16.msra.mxu0 %v1916
        %1942 = vmatpush.bf16.msra.mxu0 %v1915
        %1943 = vmatpush.bf16.msra.mxu0 %v1914
        %1944 = vmatpush.bf16.msra.mxu0 %v1913
        %1945 = vmatpush.bf16.msra.mxu0 %v1912
        %1946 = vmatpush.bf16.msra.mxu0 %v1911
        %1947 = vmatpush.bf16.msra.mxu0 %v1910
        %1948 = vmatpush.bf16.msra.mxu0 %v1909
        %1949 = vmatmul.bf16.gmra.mxu0 %v1793
        %v1950 = vpop.f32.mrf.mxu0
        %v1951 = vadd.f32 %v1843, %v1950
        %v1952 = vpop.f32.mrf.mxu0
        %v1953 = vadd.f32 %v1843, %v1952
        %1954 = vmatmul.bf16.gmra.mxu0 %v1795
        %v1955 = vpop.f32.mrf.mxu0
        %v1956 = vadd.f32 %v1843, %v1955
        %v1957 = vpop.f32.mrf.mxu0
        %v1958 = vadd.f32 %v1843, %v1957
        %1959 = vmatmul.bf16.gmra.mxu0 %v1797
        %v1960 = vpop.f32.mrf.mxu0
        %v1961 = vadd.f32 %v1843, %v1960
        %v1962 = vpop.f32.mrf.mxu0
        %v1963 = vadd.f32 %v1843, %v1962
        %1964 = vmatmul.bf16.gmra.mxu0 %v1799
        %v1965 = vpop.f32.mrf.mxu0
        %v1966 = vadd.f32 %v1843, %v1965
        %v1967 = vpop.f32.mrf.mxu0
        %v1968 = vadd.f32 %v1843, %v1967
        %1969 = vmatmul.bf16.gmra.mxu0 %v1801
        %v1970 = vpop.f32.mrf.mxu0
        %v1971 = vadd.f32 %v1843, %v1970
        %v1972 = vpop.f32.mrf.mxu0
        %v1973 = vadd.f32 %v1843, %v1972
        %1974 = vmatmul.bf16.gmra.mxu0 %v1803
        %v1975 = vpop.f32.mrf.mxu0
        %v1976 = vadd.f32 %v1843, %v1975
        %v1977 = vpop.f32.mrf.mxu0
        %v1978 = vadd.f32 %v1843, %v1977
        %1979 = vmatmul.bf16.gmra.mxu0 %v1805
        %v1980 = vpop.f32.mrf.mxu0
        %v1981 = vadd.f32 %v1843, %v1980
        %v1982 = vpop.f32.mrf.mxu0
        %v1983 = vadd.f32 %v1843, %v1982
        %1984 = vmatmul.bf16.gmra.mxu0 %v1807
        %v1985 = vpop.f32.mrf.mxu0
        %v1986 = vadd.f32 %v1843, %v1985
        %v1987 = vpop.f32.mrf.mxu0
        %v1988 = vadd.f32 %v1843, %v1987
        %1989 = vdwg.mxu0
        %1990 = vmatpush.bf16.msra.mxu0 %v1924
        %1991 = vmatpush.bf16.msra.mxu0 %v1923
        %1992 = vmatpush.bf16.msra.mxu0 %v1922
        %1993 = vmatpush.bf16.msra.mxu0 %v1921
        %1994 = vmatpush.bf16.msra.mxu0 %v1920
        %1995 = vmatpush.bf16.msra.mxu0 %v1919
        %1996 = vmatpush.bf16.msra.mxu0 %v1918
        %1997 = vmatpush.bf16.msra.mxu0 %v1917
        %1998 = vmatmul.bf16.gmra.mxu0 %v1794
        %v1999 = vpop.f32.mrf.mxu0
        %v2000 = vadd.f32 %v1951, %v1999
        %v2001 = vpop.f32.mrf.mxu0
        %v2002 = vadd.f32 %v1953, %v2001
        %2003 = vmatmul.bf16.gmra.mxu0 %v1796
        %v2004 = vpop.f32.mrf.mxu0
        %v2005 = vadd.f32 %v1956, %v2004
        %v2006 = vpop.f32.mrf.mxu0
        %v2007 = vadd.f32 %v1958, %v2006
        %2008 = vmatmul.bf16.gmra.mxu0 %v1798
        %v2009 = vpop.f32.mrf.mxu0
        %v2010 = vadd.f32 %v1961, %v2009
        %v2011 = vpop.f32.mrf.mxu0
        %v2012 = vadd.f32 %v1963, %v2011
        %2013 = vmatmul.bf16.gmra.mxu0 %v1800
        %v2014 = vpop.f32.mrf.mxu0
        %v2015 = vadd.f32 %v1966, %v2014
        %v2016 = vpop.f32.mrf.mxu0
        %v2017 = vadd.f32 %v1968, %v2016
        %2018 = vmatmul.bf16.gmra.mxu0 %v1802
        %v2019 = vpop.f32.mrf.mxu0
        %v2020 = vadd.f32 %v1971, %v2019
        %v2021 = vpop.f32.mrf.mxu0
        %v2022 = vadd.f32 %v1973, %v2021
        %2023 = vmatmul.bf16.gmra.mxu0 %v1804
        %v2024 = vpop.f32.mrf.mxu0
        %v2025 = vadd.f32 %v1976, %v2024
        %v2026 = vpop.f32.mrf.mxu0
        %v2027 = vadd.f32 %v1978, %v2026
        %2028 = vmatmul.bf16.gmra.mxu0 %v1806
        %v2029 = vpop.f32.mrf.mxu0
        %v2030 = vadd.f32 %v1981, %v2029
        %v2031 = vpop.f32.mrf.mxu0
        %v2032 = vadd.f32 %v1983, %v2031
        %2033 = vmatmul.bf16.gmra.mxu0 %v1808
        %v2034 = vpop.f32.mrf.mxu0
        %v2035 = vadd.f32 %v1986, %v2034
        %v2036 = vpop.f32.mrf.mxu0
        %v2037 = vadd.f32 %v1988, %v2036
        %2038 = vdwg.mxu0
        %v2039 = vxor.u32 %v2000, 2147483648
        %v2040 = vxor.u32 %v2002, 2147483648
        %v2041 = vxor.u32 %v2005, 2147483648
        %v2042 = vxor.u32 %v2007, 2147483648
        %v2043 = vxor.u32 %v2010, 2147483648
        %v2044 = vxor.u32 %v2012, 2147483648
        %v2045 = vxor.u32 %v2015, 2147483648
        %v2046 = vxor.u32 %v2017, 2147483648
        %v2047 = vxor.u32 %v2020, 2147483648
        %v2048 = vxor.u32 %v2022, 2147483648
        %v2049 = vxor.u32 %v2025, 2147483648
        %v2050 = vxor.u32 %v2027, 2147483648
        %v2051 = vxor.u32 %v2030, 2147483648
        %v2052 = vxor.u32 %v2032, 2147483648
        %v2053 = vxor.u32 %v2035, 2147483648
        %v2054 = vxor.u32 %v2037, 2147483648
        %v2055 = vmul.f32 %v2039, 1.442695
        %v2056 = vpow.pop %v2055
        %v2057 = vmul.f32 %v2040, 1.442695
        %v2058 = vpow.pop %v2057
        %v2059 = vmul.f32 %v2041, 1.442695
        %v2060 = vpow.pop %v2059
        %v2061 = vmul.f32 %v2042, 1.442695
        %v2062 = vpow.pop %v2061
        %v2063 = vmul.f32 %v2043, 1.442695
        %v2064 = vpow.pop %v2063
        %v2065 = vmul.f32 %v2044, 1.442695
        %v2066 = vpow.pop %v2065
        %v2067 = vmul.f32 %v2045, 1.442695
        %v2068 = vpow.pop %v2067
        %v2069 = vmul.f32 %v2046, 1.442695
        %v2070 = vpow.pop %v2069
        %v2071 = vmul.f32 %v2047, 1.442695
        %v2072 = vpow.pop %v2071
        %v2073 = vmul.f32 %v2048, 1.442695
        %v2074 = vpow.pop %v2073
        %v2075 = vmul.f32 %v2049, 1.442695
        %v2076 = vpow.pop %v2075
        %v2077 = vmul.f32 %v2050, 1.442695
        %v2078 = vpow.pop %v2077
        %v2079 = vmul.f32 %v2051, 1.442695
        %v2080 = vpow.pop %v2079
        %v2081 = vmul.f32 %v2052, 1.442695
        %v2082 = vpow.pop %v2081
        %v2083 = vmul.f32 %v2053, 1.442695
        %v2084 = vpow.pop %v2083
        %v2085 = vmul.f32 %v2054, 1.442695
        %v2086 = vpow.pop %v2085
        %v2087 = vadd.f32 %v2056, 1.0
        %v2088 = vadd.f32 %v2058, 1.0
        %v2089 = vadd.f32 %v2060, 1.0
        %v2090 = vadd.f32 %v2062, 1.0
        %v2091 = vadd.f32 %v2064, 1.0
        %v2092 = vadd.f32 %v2066, 1.0
        %v2093 = vadd.f32 %v2068, 1.0
        %v2094 = vadd.f32 %v2070, 1.0
        %v2095 = vadd.f32 %v2072, 1.0
        %v2096 = vadd.f32 %v2074, 1.0
        %v2097 = vadd.f32 %v2076, 1.0
        %v2098 = vadd.f32 %v2078, 1.0
        %v2099 = vadd.f32 %v2080, 1.0
        %v2100 = vadd.f32 %v2082, 1.0
        %v2101 = vadd.f32 %v2084, 1.0
        %v2102 = vadd.f32 %v2086, 1.0
        %v2103 = vrcp.pop %v2087
        %v2104 = vmul.f32 %v2087, %v2103
        %v2105 = vsub.f32 1.0, %v2104
        %v2106 = vmul.f32 %v2103, %v2105
        %v2107 = vadd.f32 %v2103, %v2106
        %vm2108 = vweird.f32 %v2087
        %vm2109 = vweird.f32 %v2103
        %vm2110 = vmor %vm2108, %vm2109
        %v2111 = vsel %vm2110, %v2103, %v2107
        %v2112 = vand.u32 2147483647, %v2087
        %vm2113 = vcmp.eq.f32.partialorder %v2112, 8.507059e+37
        %v2114 = vand.u32 %v2087, 2147483648
        %v2115 = vor.u32 1.1754944e-38, %v2114
        %v2116 = vsel %vm2113, %v2115, %v2111
        %v2117 = vmul.f32 1.0, %v2116
        %v2118 = vrcp.pop %v2088
        %v2119 = vmul.f32 %v2088, %v2118
        %v2120 = vsub.f32 1.0, %v2119
        %v2121 = vmul.f32 %v2118, %v2120
        %v2122 = vadd.f32 %v2118, %v2121
        %vm2123 = vweird.f32 %v2088
        %vm2124 = vweird.f32 %v2118
        %vm2125 = vmor %vm2123, %vm2124
        %v2126 = vsel %vm2125, %v2118, %v2122
        %v2127 = vand.u32 2147483647, %v2088
        %vm2128 = vcmp.eq.f32.partialorder %v2127, 8.507059e+37
        %v2129 = vand.u32 %v2088, 2147483648
        %v2130 = vor.u32 1.1754944e-38, %v2129
        %v2131 = vsel %vm2128, %v2130, %v2126
        %v2132 = vmul.f32 1.0, %v2131
        %v2133 = vrcp.pop %v2089
        %v2134 = vmul.f32 %v2089, %v2133
        %v2135 = vsub.f32 1.0, %v2134
        %v2136 = vmul.f32 %v2133, %v2135
        %v2137 = vadd.f32 %v2133, %v2136
        %vm2138 = vweird.f32 %v2089
        %vm2139 = vweird.f32 %v2133
        %vm2140 = vmor %vm2138, %vm2139
        %v2141 = vsel %vm2140, %v2133, %v2137
        %v2142 = vand.u32 2147483647, %v2089
        %vm2143 = vcmp.eq.f32.partialorder %v2142, 8.507059e+37
        %v2144 = vand.u32 %v2089, 2147483648
        %v2145 = vor.u32 1.1754944e-38, %v2144
        %v2146 = vsel %vm2143, %v2145, %v2141
        %v2147 = vmul.f32 1.0, %v2146
        %v2148 = vrcp.pop %v2090
        %v2149 = vmul.f32 %v2090, %v2148
        %v2150 = vsub.f32 1.0, %v2149
        %v2151 = vmul.f32 %v2148, %v2150
        %v2152 = vadd.f32 %v2148, %v2151
        %vm2153 = vweird.f32 %v2090
        %vm2154 = vweird.f32 %v2148
        %vm2155 = vmor %vm2153, %vm2154
        %v2156 = vsel %vm2155, %v2148, %v2152
        %v2157 = vand.u32 2147483647, %v2090
        %vm2158 = vcmp.eq.f32.partialorder %v2157, 8.507059e+37
        %v2159 = vand.u32 %v2090, 2147483648
        %v2160 = vor.u32 1.1754944e-38, %v2159
        %v2161 = vsel %vm2158, %v2160, %v2156
        %v2162 = vmul.f32 1.0, %v2161
        %v2163 = vrcp.pop %v2091
        %v2164 = vmul.f32 %v2091, %v2163
        %v2165 = vsub.f32 1.0, %v2164
        %v2166 = vmul.f32 %v2163, %v2165
        %v2167 = vadd.f32 %v2163, %v2166
        %vm2168 = vweird.f32 %v2091
        %vm2169 = vweird.f32 %v2163
        %vm2170 = vmor %vm2168, %vm2169
        %v2171 = vsel %vm2170, %v2163, %v2167
        %v2172 = vand.u32 2147483647, %v2091
        %vm2173 = vcmp.eq.f32.partialorder %v2172, 8.507059e+37
        %v2174 = vand.u32 %v2091, 2147483648
        %v2175 = vor.u32 1.1754944e-38, %v2174
        %v2176 = vsel %vm2173, %v2175, %v2171
        %v2177 = vmul.f32 1.0, %v2176
        %v2178 = vrcp.pop %v2092
        %v2179 = vmul.f32 %v2092, %v2178
        %v2180 = vsub.f32 1.0, %v2179
        %v2181 = vmul.f32 %v2178, %v2180
        %v2182 = vadd.f32 %v2178, %v2181
        %vm2183 = vweird.f32 %v2092
        %vm2184 = vweird.f32 %v2178
        %vm2185 = vmor %vm2183, %vm2184
        %v2186 = vsel %vm2185, %v2178, %v2182
        %v2187 = vand.u32 2147483647, %v2092
        %vm2188 = vcmp.eq.f32.partialorder %v2187, 8.507059e+37
        %v2189 = vand.u32 %v2092, 2147483648
        %v2190 = vor.u32 1.1754944e-38, %v2189
        %v2191 = vsel %vm2188, %v2190, %v2186
        %v2192 = vmul.f32 1.0, %v2191
        %v2193 = vrcp.pop %v2093
        %v2194 = vmul.f32 %v2093, %v2193
        %v2195 = vsub.f32 1.0, %v2194
        %v2196 = vmul.f32 %v2193, %v2195
        %v2197 = vadd.f32 %v2193, %v2196
        %vm2198 = vweird.f32 %v2093
        %vm2199 = vweird.f32 %v2193
        %vm2200 = vmor %vm2198, %vm2199
        %v2201 = vsel %vm2200, %v2193, %v2197
        %v2202 = vand.u32 2147483647, %v2093
        %vm2203 = vcmp.eq.f32.partialorder %v2202, 8.507059e+37
        %v2204 = vand.u32 %v2093, 2147483648
        %v2205 = vor.u32 1.1754944e-38, %v2204
        %v2206 = vsel %vm2203, %v2205, %v2201
        %v2207 = vmul.f32 1.0, %v2206
        %v2208 = vrcp.pop %v2094
        %v2209 = vmul.f32 %v2094, %v2208
        %v2210 = vsub.f32 1.0, %v2209
        %v2211 = vmul.f32 %v2208, %v2210
        %v2212 = vadd.f32 %v2208, %v2211
        %vm2213 = vweird.f32 %v2094
        %vm2214 = vweird.f32 %v2208
        %vm2215 = vmor %vm2213, %vm2214
        %v2216 = vsel %vm2215, %v2208, %v2212
        %v2217 = vand.u32 2147483647, %v2094
        %vm2218 = vcmp.eq.f32.partialorder %v2217, 8.507059e+37
        %v2219 = vand.u32 %v2094, 2147483648
        %v2220 = vor.u32 1.1754944e-38, %v2219
        %v2221 = vsel %vm2218, %v2220, %v2216
        %v2222 = vmul.f32 1.0, %v2221
        %v2223 = vrcp.pop %v2095
        %v2224 = vmul.f32 %v2095, %v2223
        %v2225 = vsub.f32 1.0, %v2224
        %v2226 = vmul.f32 %v2223, %v2225
        %v2227 = vadd.f32 %v2223, %v2226
        %vm2228 = vweird.f32 %v2095
        %vm2229 = vweird.f32 %v2223
        %vm2230 = vmor %vm2228, %vm2229
        %v2231 = vsel %vm2230, %v2223, %v2227
        %v2232 = vand.u32 2147483647, %v2095
        %vm2233 = vcmp.eq.f32.partialorder %v2232, 8.507059e+37
        %v2234 = vand.u32 %v2095, 2147483648
        %v2235 = vor.u32 1.1754944e-38, %v2234
        %v2236 = vsel %vm2233, %v2235, %v2231
        %v2237 = vmul.f32 1.0, %v2236
        %v2238 = vrcp.pop %v2096
        %v2239 = vmul.f32 %v2096, %v2238
        %v2240 = vsub.f32 1.0, %v2239
        %v2241 = vmul.f32 %v2238, %v2240
        %v2242 = vadd.f32 %v2238, %v2241
        %vm2243 = vweird.f32 %v2096
        %vm2244 = vweird.f32 %v2238
        %vm2245 = vmor %vm2243, %vm2244
        %v2246 = vsel %vm2245, %v2238, %v2242
        %v2247 = vand.u32 2147483647, %v2096
        %vm2248 = vcmp.eq.f32.partialorder %v2247, 8.507059e+37
        %v2249 = vand.u32 %v2096, 2147483648
        %v2250 = vor.u32 1.1754944e-38, %v2249
        %v2251 = vsel %vm2248, %v2250, %v2246
        %v2252 = vmul.f32 1.0, %v2251
        %v2253 = vrcp.pop %v2097
        %v2254 = vmul.f32 %v2097, %v2253
        %v2255 = vsub.f32 1.0, %v2254
        %v2256 = vmul.f32 %v2253, %v2255
        %v2257 = vadd.f32 %v2253, %v2256
        %vm2258 = vweird.f32 %v2097
        %vm2259 = vweird.f32 %v2253
        %vm2260 = vmor %vm2258, %vm2259
        %v2261 = vsel %vm2260, %v2253, %v2257
        %v2262 = vand.u32 2147483647, %v2097
        %vm2263 = vcmp.eq.f32.partialorder %v2262, 8.507059e+37
        %v2264 = vand.u32 %v2097, 2147483648
        %v2265 = vor.u32 1.1754944e-38, %v2264
        %v2266 = vsel %vm2263, %v2265, %v2261
        %v2267 = vmul.f32 1.0, %v2266
        %v2268 = vrcp.pop %v2098
        %v2269 = vmul.f32 %v2098, %v2268
        %v2270 = vsub.f32 1.0, %v2269
        %v2271 = vmul.f32 %v2268, %v2270
        %v2272 = vadd.f32 %v2268, %v2271
        %vm2273 = vweird.f32 %v2098
        %vm2274 = vweird.f32 %v2268
        %vm2275 = vmor %vm2273, %vm2274
        %v2276 = vsel %vm2275, %v2268, %v2272
        %v2277 = vand.u32 2147483647, %v2098
        %vm2278 = vcmp.eq.f32.partialorder %v2277, 8.507059e+37
        %v2279 = vand.u32 %v2098, 2147483648
        %v2280 = vor.u32 1.1754944e-38, %v2279
        %v2281 = vsel %vm2278, %v2280, %v2276
        %v2282 = vmul.f32 1.0, %v2281
        %v2283 = vrcp.pop %v2099
        %v2284 = vmul.f32 %v2099, %v2283
        %v2285 = vsub.f32 1.0, %v2284
        %v2286 = vmul.f32 %v2283, %v2285
        %v2287 = vadd.f32 %v2283, %v2286
        %vm2288 = vweird.f32 %v2099
        %vm2289 = vweird.f32 %v2283
        %vm2290 = vmor %vm2288, %vm2289
        %v2291 = vsel %vm2290, %v2283, %v2287
        %v2292 = vand.u32 2147483647, %v2099
        %vm2293 = vcmp.eq.f32.partialorder %v2292, 8.507059e+37
        %v2294 = vand.u32 %v2099, 2147483648
        %v2295 = vor.u32 1.1754944e-38, %v2294
        %v2296 = vsel %vm2293, %v2295, %v2291
        %v2297 = vmul.f32 1.0, %v2296
        %v2298 = vrcp.pop %v2100
        %v2299 = vmul.f32 %v2100, %v2298
        %v2300 = vsub.f32 1.0, %v2299
        %v2301 = vmul.f32 %v2298, %v2300
        %v2302 = vadd.f32 %v2298, %v2301
        %vm2303 = vweird.f32 %v2100
        %vm2304 = vweird.f32 %v2298
        %vm2305 = vmor %vm2303, %vm2304
        %v2306 = vsel %vm2305, %v2298, %v2302
        %v2307 = vand.u32 2147483647, %v2100
        %vm2308 = vcmp.eq.f32.partialorder %v2307, 8.507059e+37
        %v2309 = vand.u32 %v2100, 2147483648
        %v2310 = vor.u32 1.1754944e-38, %v2309
        %v2311 = vsel %vm2308, %v2310, %v2306
        %v2312 = vmul.f32 1.0, %v2311
        %v2313 = vrcp.pop %v2101
        %v2314 = vmul.f32 %v2101, %v2313
        %v2315 = vsub.f32 1.0, %v2314
        %v2316 = vmul.f32 %v2313, %v2315
        %v2317 = vadd.f32 %v2313, %v2316
        %vm2318 = vweird.f32 %v2101
        %vm2319 = vweird.f32 %v2313
        %vm2320 = vmor %vm2318, %vm2319
        %v2321 = vsel %vm2320, %v2313, %v2317
        %v2322 = vand.u32 2147483647, %v2101
        %vm2323 = vcmp.eq.f32.partialorder %v2322, 8.507059e+37
        %v2324 = vand.u32 %v2101, 2147483648
        %v2325 = vor.u32 1.1754944e-38, %v2324
        %v2326 = vsel %vm2323, %v2325, %v2321
        %v2327 = vmul.f32 1.0, %v2326
        %v2328 = vrcp.pop %v2102
        %v2329 = vmul.f32 %v2102, %v2328
        %v2330 = vsub.f32 1.0, %v2329
        %v2331 = vmul.f32 %v2328, %v2330
        %v2332 = vadd.f32 %v2328, %v2331
        %vm2333 = vweird.f32 %v2102
        %vm2334 = vweird.f32 %v2328
        %vm2335 = vmor %vm2333, %vm2334
        %v2336 = vsel %vm2335, %v2328, %v2332
        %v2337 = vand.u32 2147483647, %v2102
        %vm2338 = vcmp.eq.f32.partialorder %v2337, 8.507059e+37
        %v2339 = vand.u32 %v2102, 2147483648
        %v2340 = vor.u32 1.1754944e-38, %v2339
        %v2341 = vsel %vm2338, %v2340, %v2336
        %v2342 = vmul.f32 1.0, %v2341
        %2343 = vst [vmem:[%s362] sm:$0xff] %v2117
        %2344 = vst [vmem:[%s362 + $0x8] sm:$0xff] %v2132
        %2345 = vst [vmem:[%s362 + $0x10] sm:$0xff] %v2147
        %2346 = vst [vmem:[%s362 + $0x18] sm:$0xff] %v2162
        %2347 = vst [vmem:[%s362 + $0x20] sm:$0xff] %v2177
        %2348 = vst [vmem:[%s362 + $0x28] sm:$0xff] %v2192
        %2349 = vst [vmem:[%s362 + $0x30] sm:$0xff] %v2207
        %2350 = vst [vmem:[%s362 + $0x38] sm:$0xff] %v2222
        %2351 = vst [vmem:[%s362 + $0x40] sm:$0xff] %v2237
        %2352 = vst [vmem:[%s362 + $0x48] sm:$0xff] %v2252
        %2353 = vst [vmem:[%s362 + $0x50] sm:$0xff] %v2267
        %2354 = vst [vmem:[%s362 + $0x58] sm:$0xff] %v2282
        %2355 = vst [vmem:[%s362 + $0x60] sm:$0xff] %v2297
        %2356 = vst [vmem:[%s362 + $0x68] sm:$0xff] %v2312
        %2357 = vst [vmem:[%s362 + $0x70] sm:$0xff] %v2327
        %2358 = vst [vmem:[%s362 + $0x78] sm:$0xff] %v2342
        %s2359 = sand.u32 %s186, 1
        %s2360 = scalar_lea.sflag [#allocation4], %s2359
        %s2361 = sand.u32 %s186, 1
        %s2362 = smul.addr %s2361, 128
        %s2363 = scalar_lea.vmem [#allocation11], %s2362
        // Predicated region
        $region69: #{tpu_custom_call.1} parent=47 // pred_check
          %p2364 = pneg %p196
        $region70: #{tpu_custom_call.1} parent=47 // pred_check_branch
          %2366 = sbr.rel (%p2364) target = $region72
        $region71: #{tpu_custom_call.1} parent=47 // pred_region
          %s2367 = smul.u32 16, %s26
          %2369 = vsyncadd %s2360, 0
          %s2370 = smul.addr %s2367, 8
          %s2371 = scalar_lea.hbm %s7, %s2370
          %s2372 = sshll.u32 %s2363, 4
          %s2373 = int_to_ptr.vmem [resolvable:$true] %s2372
          %s2374 = sshll.u32 %s2371, 4
          %s2375 = int_to_ptr.hbm [resolvable:$true] %s2374
          %2380 = dma.vmem_to_hbm [thread:$0]  %s2373, 2048, %s2375, %s2360, 128, 128, 8
        $region72: #{tpu_custom_call.1} parent=47 // pred_fallthru
          _
      $region48: #{tpu_custom_call.1} parent=5 // pred_fallthru
        _
      %p2381 = scmp.le.s32.totalorder 2, %s21
      // Predicated region
      $region73: #{tpu_custom_call.1} parent=5 // pred_check
        %p2382 = pneg %p2381
      $region74: #{tpu_custom_call.1} parent=5 // pred_check_branch
        %2384 = sbr.rel (%p2382) target = $region76
      $region75: #{tpu_custom_call.1} parent=5 // pred_region
        %s2385 = ssub.s32 %s21, 2
        // Predicated region
        $region77: #{tpu_custom_call.1} parent=75 // pred_check
          %p2386 = pneg %p202
        $region78: #{tpu_custom_call.1} parent=75 // pred_check_branch
          %2388 = sbr.rel (%p2386) target = $region80
        $region79: #{tpu_custom_call.1} parent=75 // pred_region
          %s2389 = sand.u32 %s187, 1
          %s2390 = scalar_lea.sflag [#allocation4], %s2389
          %s2391 = sand.u32 %s187, 1
          %s2392 = smul.addr %s2391, 128
          %s2393 = scalar_lea.vmem [#allocation11], %s2392
          %2395 = dma.done %s2390, 2048
        $region80: #{tpu_custom_call.1} parent=75 // pred_fallthru
          _
      $region76: #{tpu_custom_call.1} parent=5 // pred_fallthru
        _
    $region6: #{tpu_custom_call.1} parent=1 // loop_footer
      %s25 = sadd.s32 1, %s21
    $region7: #{tpu_custom_call.1} parent=1 // loop_footer_branch
      %20 = sbr.rel target = $region3
    $region8: #{tpu_custom_call.1} parent=1 // loop_exit
      _
    %2396 = vsyncpa [#allocation3], 1
    %s2397 = scalar_lea.sflag [#allocation3], 1
    %2398 = vsyncpa %s2397, 1
    %2399 = vsyncpa [#allocation6], 1
    %2400 = vsyncpa [#allocation9], 1
    %2401 = vsyncpa [#allocation4], 1
    %s2402 = scalar_lea.sflag [#allocation4], 1
    %2403 = vsyncpa %s2402, 1

</llo_original>
